<compile_context>
chip_gen: v7x
topology: tpu7x:2x2x1
jax: 0.10.0
libtpu: 0.0.40
codegen_flags: <defaults>
</compile_context>

<pallas_src>
import jax
import jax.numpy as jnp
from jax.experimental import pallas as pl
from jax.experimental.pallas import tpu as pltpu

_HIGHEST = jax.lax.Precision.HIGHEST


def mlp_kernel(x_ref, w1_ref, b1_ref, w2_ref, b2_ref, w3_ref, b3_ref, o_ref):
    # x block is (TB/P, P*D): each row holds P consecutive batch rows packed
    # along lanes; the weights are block-diagonal replicas, so these packed
    # GEMMs are exactly equivalent to per-row Linear layers.
    x = x_ref[...].astype(jnp.float32)  # accepts f32 or bf16 input stream

    # Layer 1: Linear + ReLU  (Dropout == identity at inference).
    h1 = jnp.dot(x, w1_ref[...], preferred_element_type=jnp.float32,
                 precision=_HIGHEST)
    h1 = jnp.maximum(h1 + b1_ref[...], 0.0)

    # Layer 2: Linear + ReLU  (Dropout == identity at inference).
    h2 = jnp.dot(h1, w2_ref[...], preferred_element_type=jnp.float32,
                 precision=_HIGHEST)
    h2 = jnp.maximum(h2 + b2_ref[...], 0.0)

    # Layer 3 (out_features = 1): block-diagonal w3 gives a (TB/P, P) result,
    # one logit per packed batch row.  b3 is a scalar read from SMEM.
    out = jnp.dot(h2, w3_ref[...], preferred_element_type=jnp.float32,
                  precision=_HIGHEST) + b3_ref[0, 0]
    o_ref[...] = out.astype(o_ref.dtype)


def _cdiv(a, b):
    return -(-a // b)


def _round_up(n, m):
    return _cdiv(n, m) * m


def interaction_classifier_forward(x, params, *, block_b=8192):
    """Fused MLP forward. Matches PyTorch's model(x).squeeze() at inference.

    block_b: batch tile size (rows of x per grid step), rounded to a multiple
    of 32.  Default 8192 targets >=1 us of x DMA per grid step on v5e/v6e/v7x;
    real VMEM footprint at TB=8192 (lane padding included) is ~8 MiB, well
    under the 48 MiB vmem_limit_bytes set below, so TB can be pushed to 16384
    on v5e/v6e if desired.  Keep TB <= 8192 on v7x (64 MiB VMEM per TC).
    """
    w1, b1, w2, b2, w3, b3 = params
    B, D = x.shape
    H1 = int(w1.shape[1])
    H2 = int(w2.shape[1])

    # Lane packing factor: pack P batch rows per 128-lane vreg row.
    if D <= 128 and 128 % D == 0:
        P = 128 // D
    else:
        P = 1  # fallback for awkward feature dims: no packing

    # Block-diagonal replicated weights (tiny: <0.5 MiB total, VMEM-resident).
    eye = jnp.eye(P, dtype=jnp.float32)
    w1_bd = jnp.kron(eye, w1.astype(jnp.float32))       # (P*D,  P*H1)
    w2_bd = jnp.kron(eye, w2.astype(jnp.float32))       # (P*H1, P*H2)
    w3_bd = jnp.kron(eye, w3.astype(jnp.float32).T)     # (P*H2, P)
    b1_bd = jnp.tile(b1.astype(jnp.float32), (1, P))    # (1, P*H1)
    b2_bd = jnp.tile(b2.astype(jnp.float32), (1, P))    # (1, P*H2)
    b3_s = jnp.reshape(b3, (1, 1)).astype(jnp.float32)  # scalar in SMEM

    # Batch tiling: TB multiple of 8*P so the packed tile satisfies the
    # (8, 128) sublane constraint.
    align = 8 * P
    block_b = max(align, (int(block_b) // align) * align)
    tiles = _cdiv(B, block_b)
    if tiles == 1 and B >= 4096:
        tiles = 2  # >=2 grid steps: v7x megacore split + DMA/compute overlap
    TB = _round_up(_cdiv(B, tiles), align)
    Bp = TB * tiles
    if Bp != B:
        x = jnp.pad(x, ((0, Bp - B), (0, 0)))  # padded rows sliced off below

    xp = x.reshape(Bp // P, D * P)  # free: contiguous repack, P rows per vreg row
    TBp = TB // P
    grid = (tiles,)

    itemsize = jnp.dtype(x.dtype).itemsize
    weight_bytes = 4 * int(w1_bd.size + w2_bd.size + w3_bd.size
                           + b1_bd.size + b2_bd.size + 1)
    cost = pl.CostEstimate(
        flops=2 * B * (D * H1 + H1 * H2 + H2),
        transcendentals=0,
        bytes_accessed=B * D * itemsize + B * 4 + weight_bytes,
    )

    out = pl.pallas_call(
        mlp_kernel,
        grid=grid,
        in_specs=[
            # x: streamed packed tiles, auto double-buffered by Pallas.
            pl.BlockSpec((TBp, D * P), lambda i: (i, 0)),
            # Block-diagonal weights/biases: resident in VMEM across all steps.
            pl.BlockSpec(w1_bd.shape, lambda i: (0, 0)),
            pl.BlockSpec(b1_bd.shape, lambda i: (0, 0)),
            pl.BlockSpec(w2_bd.shape, lambda i: (0, 0)),
            pl.BlockSpec(b2_bd.shape, lambda i: (0, 0)),
            pl.BlockSpec(w3_bd.shape, lambda i: (0, 0)),
            # Scalar output bias in SMEM.
            pl.BlockSpec((1, 1), lambda i: (0, 0),
                         memory_space=pltpu.MemorySpace.SMEM),
        ],
        out_specs=pl.BlockSpec((TBp, P), lambda i: (i, 0)),
        out_shape=jax.ShapeDtypeStruct((Bp // P, P), jnp.float32),
        compiler_params=pltpu.CompilerParams(
            dimension_semantics=("parallel",),
            vmem_limit_bytes=48 * 1024 * 1024),
        cost_estimate=cost,
    )(xp, w1_bd, b1_bd, w2_bd, b2_bd, w3_bd, b3_s)

    # (Bp/P, P) -> (Bp,) restores original batch order; drop padding; matches
    # PyTorch's .squeeze() on the (B, 1) logits.
    return out.reshape(Bp)[:B]


def init_params(key, input_dim, hidden1, hidden2):
    """Deterministic synthetic parameters (uniform +-1/sqrt(fan_in), like nn.Linear).

    w1, w2 are stored pre-transposed as [in, out] so the kernel computes
    y = x @ W + b (== PyTorch's x @ W.T + b).  w3 is stored in PyTorch's native
    [out=1, in] layout.
    """
    ks = jax.random.split(key, 6)

    def linear_t(kw, kb, fan_in, fan_out):
        bound = 1.0 / jnp.sqrt(fan_in)
        w = jax.random.uniform(kw, (fan_in, fan_out), jnp.float32, -bound, bound)
        b = jax.random.uniform(kb, (1, fan_out), jnp.float32, -bound, bound)
        return w, b

    w1, b1 = linear_t(ks[0], ks[1], input_dim, hidden1)
    w2, b2 = linear_t(ks[2], ks[3], hidden1, hidden2)
    bound3 = 1.0 / jnp.sqrt(hidden2)
    w3 = jax.random.uniform(ks[4], (1, hidden2), jnp.float32, -bound3, bound3)
    b3 = jax.random.uniform(ks[5], (1, 1), jnp.float32, -bound3, bound3)
    return (w1, b1, w2, b2, w3, b3)


if __name__ == "__main__":
    # Small shapes consistent with the module. B=200 with block_b=64 exercises
    # a multi-step grid (grid=(4,)) plus the batch-padding path; a second call
    # uses the production default tile (grid=(1,)).
    B, INPUT_DIM, HIDDEN1, HIDDEN2 = 200, 32, 64, 32
    DROPOUT = 0.5  # identity at inference; no RNG needed in the forward pass

    key = jax.random.PRNGKey(0)
    k_x, k_p = jax.random.split(key)

    x = jax.random.normal(k_x, (B, INPUT_DIM), dtype=jnp.float32)
    params = init_params(k_p, INPUT_DIM, HIDDEN1, HIDDEN2)

    y_small = interaction_classifier_forward(x, params, block_b=64)
    y_small = jax.block_until_ready(y_small)
    y_big = interaction_classifier_forward(x, params)  # default block_b=8192
    y_big = jax.block_until_ready(y_big)

    # Pure-JAX f32 reference (full-precision dots), same math as the PyTorch module.
    w1, b1, w2, b2, w3, b3 = params
    h1 = jnp.maximum(jnp.dot(x, w1, precision=_HIGHEST) + b1, 0.0)
    h2 = jnp.maximum(jnp.dot(h1, w2, precision=_HIGHEST) + b2, 0.0)
    ref = jnp.dot(h2, w3.T, precision=_HIGHEST)[:, 0] + b3[0, 0]

    assert y_small.shape == (B,), y_small.shape
    assert y_big.shape == (B,), y_big.shape
    assert jnp.allclose(y_small, ref, atol=1e-3, rtol=1e-3)
    assert jnp.allclose(y_big, ref, atol=1e-3, rtol=1e-3)

    print("KERNEL_OK")
</pallas_src>

<mosaic_0001>
module attributes {stable_mosaic.version = 11 : i64} {
  func.func @mlp_kernel(%arg0: i32, %arg1: memref<16x128xf32, #tpu.memory_space<vmem>>, %arg2: memref<128x256xf32, #tpu.memory_space<vmem>>, %arg3: memref<1x256xf32, #tpu.memory_space<vmem>>, %arg4: memref<256x128xf32, #tpu.memory_space<vmem>>, %arg5: memref<1x128xf32, #tpu.memory_space<vmem>>, %arg6: memref<128x4xf32, #tpu.memory_space<vmem>>, %arg7: memref<1x1xf32, #tpu.memory_space<smem>>, %arg8: memref<16x4xf32, #tpu.memory_space<vmem>>) attributes {dimension_semantics = [#tpu.dimension_semantics<parallel>], iteration_bounds = array<i64: 4>, scalar_prefetch = 0 : i64, scratch_operands = 0 : i64, tpu.core_type = #tpu.core_type<tc>, window_params = [{transform_indices = @transform_0, window_bounds = array<i64: 16, 128>}, {pipeline_mode = #tpu.pipeline_mode<synchronous>, transform_indices = @transform_1, window_bounds = array<i64: 128, 256>}, {pipeline_mode = #tpu.pipeline_mode<synchronous>, transform_indices = @transform_2, window_bounds = array<i64: 1, 256>}, {pipeline_mode = #tpu.pipeline_mode<synchronous>, transform_indices = @transform_3, window_bounds = array<i64: 256, 128>}, {pipeline_mode = #tpu.pipeline_mode<synchronous>, transform_indices = @transform_4, window_bounds = array<i64: 1, 128>}, {pipeline_mode = #tpu.pipeline_mode<synchronous>, transform_indices = @transform_5, window_bounds = array<i64: 128, 4>}, {transform_indices = @transform_6, window_bounds = array<i64: 1, 1>}, {transform_indices = @transform_7, window_bounds = array<i64: 16, 4>}]} {
    %c0 = arith.constant 0 : index
    %c0_0 = arith.constant 0 : index
    %0 = vector.load %arg1[%c0, %c0_0] : memref<16x128xf32, #tpu.memory_space<vmem>>, vector<16x128xf32>
    %c0_1 = arith.constant 0 : index
    %c0_2 = arith.constant 0 : index
    %1 = vector.load %arg2[%c0_1, %c0_2] : memref<128x256xf32, #tpu.memory_space<vmem>>, vector<128x256xf32>
    %cst = arith.constant dense<0.000000e+00> : vector<16x256xf32>
    %2 = tpu.matmul %0, %1, %cst {dimension_numbers = #tpu.dot_dimension_numbers<[1], [0], [0], [1], [0, 0, 1, 1], [], []>, precision = #tpu.contract_precision<fp32>} : vector<16x128xf32>, vector<128x256xf32>, vector<16x256xf32> -> vector<16x256xf32>
    %c0_3 = arith.constant 0 : index
    %c0_4 = arith.constant 0 : index
    %3 = vector.load %arg3[%c0_3, %c0_4] : memref<1x256xf32, #tpu.memory_space<vmem>>, vector<1x256xf32>
    %4 = vector.broadcast %3 : vector<1x256xf32> to vector<16x256xf32>
    %5 = arith.addf %2, %4 : vector<16x256xf32>
    %cst_5 = arith.constant 0.000000e+00 : f32
    %6 = vector.broadcast %cst_5 : f32 to vector<16x256xf32>
    %7 = arith.maximumf %5, %6 : vector<16x256xf32>
    %c0_6 = arith.constant 0 : index
    %c0_7 = arith.constant 0 : index
    %8 = vector.load %arg4[%c0_6, %c0_7] : memref<256x128xf32, #tpu.memory_space<vmem>>, vector<256x128xf32>
    %cst_8 = arith.constant dense<0.000000e+00> : vector<16x128xf32>
    %9 = tpu.matmul %7, %8, %cst_8 {dimension_numbers = #tpu.dot_dimension_numbers<[1], [0], [0], [1], [0, 0, 1, 1], [], []>, precision = #tpu.contract_precision<fp32>} : vector<16x256xf32>, vector<256x128xf32>, vector<16x128xf32> -> vector<16x128xf32>
    %c0_9 = arith.constant 0 : index
    %c0_10 = arith.constant 0 : index
    %10 = vector.load %arg5[%c0_9, %c0_10] : memref<1x128xf32, #tpu.memory_space<vmem>>, vector<1x128xf32>
    %11 = vector.broadcast %10 : vector<1x128xf32> to vector<16x128xf32>
    %12 = arith.addf %9, %11 : vector<16x128xf32>
    %cst_11 = arith.constant 0.000000e+00 : f32
    %13 = vector.broadcast %cst_11 : f32 to vector<16x128xf32>
    %14 = arith.maximumf %12, %13 : vector<16x128xf32>
    %c0_12 = arith.constant 0 : index
    %c0_13 = arith.constant 0 : index
    %15 = vector.load %arg6[%c0_12, %c0_13] : memref<128x4xf32, #tpu.memory_space<vmem>>, vector<128x4xf32>
    %cst_14 = arith.constant dense<0.000000e+00> : vector<16x4xf32>
    %16 = tpu.matmul %14, %15, %cst_14 {dimension_numbers = #tpu.dot_dimension_numbers<[1], [0], [0], [1], [0, 0, 1, 1], [], []>, precision = #tpu.contract_precision<fp32>} : vector<16x128xf32>, vector<128x4xf32>, vector<16x4xf32> -> vector<16x4xf32>
    %c0_15 = arith.constant 0 : index
    %c0_16 = arith.constant 0 : index
    %17 = memref.load %arg7[%c0_15, %c0_16] : memref<1x1xf32, #tpu.memory_space<smem>>
    %18 = vector.broadcast %17 : f32 to vector<16x4xf32>
    %19 = arith.addf %16, %18 : vector<16x4xf32>
    %c0_17 = arith.constant 0 : index
    %c0_18 = arith.constant 0 : index
    %20 = vector.load %arg8[%c0_17, %c0_18] : memref<16x4xf32, #tpu.memory_space<vmem>>, vector<16x4xf32>
    tpu.vector_store %arg8[%c0_17, %c0_18], %19 {strides = array<i32>} : memref<16x4xf32, #tpu.memory_space<vmem>>, vector<16x4xf32>,
    return
  }
  func.func @transform_0(%arg0: i32) -> (i32, i32) {
    %c0_i32 = arith.constant 0 : i32
    %c0_i32_0 = arith.constant 0 : i32
    return %arg0, %c0_i32 : i32, i32
  }
  func.func @transform_1(%arg0: i32) -> (i32, i32) {
    %c0_i32 = arith.constant 0 : i32
    %c0_i32_0 = arith.constant 0 : i32
    %c0_i32_1 = arith.constant 0 : i32
    return %c0_i32, %c0_i32_0 : i32, i32
  }
  func.func @transform_2(%arg0: i32) -> (i32, i32) {
    %c0_i32 = arith.constant 0 : i32
    %c0_i32_0 = arith.constant 0 : i32
    %c0_i32_1 = arith.constant 0 : i32
    return %c0_i32, %c0_i32_0 : i32, i32
  }
  func.func @transform_3(%arg0: i32) -> (i32, i32) {
    %c0_i32 = arith.constant 0 : i32
    %c0_i32_0 = arith.constant 0 : i32
    %c0_i32_1 = arith.constant 0 : i32
    return %c0_i32, %c0_i32_0 : i32, i32
  }
  func.func @transform_4(%arg0: i32) -> (i32, i32) {
    %c0_i32 = arith.constant 0 : i32
    %c0_i32_0 = arith.constant 0 : i32
    %c0_i32_1 = arith.constant 0 : i32
    return %c0_i32, %c0_i32_0 : i32, i32
  }
  func.func @transform_5(%arg0: i32) -> (i32, i32) {
    %c0_i32 = arith.constant 0 : i32
    %c0_i32_0 = arith.constant 0 : i32
    %c0_i32_1 = arith.constant 0 : i32
    return %c0_i32, %c0_i32_0 : i32, i32
  }
  func.func @transform_6(%arg0: i32) -> (i32, i32) {
    %c0_i32 = arith.constant 0 : i32
    %c0_i32_0 = arith.constant 0 : i32
    %c0_i32_1 = arith.constant 0 : i32
    return %c0_i32, %c0_i32_0 : i32, i32
  }
  func.func @transform_7(%arg0: i32) -> (i32, i32) {
    %c0_i32 = arith.constant 0 : i32
    %c0_i32_0 = arith.constant 0 : i32
    return %arg0, %c0_i32 : i32, i32
  }
}

</mosaic_0001>

<llo_original>
// kernel: tpu_custom_call.1
$region0: #{tpu_custom_call.1}
  #allocation0 [shape = 'u32[]', space=smem, size = 0x4, offset = 0x4, fixed_abs, tag = 'smem constant byte address 0x4 - core index']
  #allocation1 [shape = 'u32[144,128]{1,0:T(1,128)}', space=vmem, size = 0x12000, scoped, tag = 'internal scratch']
  #allocation2 [shape = 'f32[1,1]{1,0:T(1,128)S(6)}', space=smem, size = 0x200, scoped, tag = 'scoped memory for tpu_custom_call.1']
  %s0 = inlined_call_operand.vmem [shape: f32[64,128], index: 0, kind: input, shape index: {}]
  %s1 = inlined_call_operand.hbm [shape: f32[128,256], index: 1, kind: input, shape index: {}]
  %s2 = inlined_call_operand.vmem [shape: f32[1,256], index: 2, kind: input, shape index: {}]
  %s3 = inlined_call_operand.hbm [shape: f32[256,128], index: 3, kind: input, shape index: {}]
  %s4 = inlined_call_operand.vmem [shape: f32[1,128], index: 4, kind: input, shape index: {}]
  %s5 = inlined_call_operand.vmem [shape: f32[128,4], index: 5, kind: input, shape index: {}]
  %s6 = inlined_call_operand.<no memory space> [shape: f32[1,1], index: 6, kind: input, shape index: {}]
  %s7 = inlined_call_operand.vmem [shape: f32[64,4], index: 7, kind: output, shape index: {}]
  %s8 = sld [smem:[#allocation0]]
  $region69: #{tpu_custom_call.1} parent=0
    _
  %s10 = ssub.s32 1, %s8
  %s11 = scalar_select 0, %s10, %s8
  %12 = sst [smem:[#allocation2]] %s6
  $region1: #{tpu_custom_call.1} parent=0
    #allocation3 [shape = 'u8[131072]{0}', space=vmem, size = 0x20000, scoped, tag = 'input window, operand 1, single buffered']
    #allocation4 [shape = 's32[2]{0}', space=sflag, size = 0x8, scoped, tag = 'scoped memory for tpu_custom_call.1']
    #allocation5 [shape = 'u8[131072]{0}', space=vmem, size = 0x20000, scoped, tag = 'input window, operand 3, single buffered']
    #allocation6 [shape = 's32[1]{0}', space=sflag, size = 0x4, scoped, tag = 'scoped memory for tpu_custom_call.1']
    %13 = vsyncpa [#allocation4], 0
    %14 = vsyncpa [#allocation6], 0
    loop: start=0, step=1, limit=6
    $region2: #{tpu_custom_call.1} parent=1 // loop_pre_header
      _
    $region3: #{tpu_custom_call.1} parent=1 // loop_header
      %s16 = sphi 0, %s20
      %p17 = scmp.ge.s32.totalorder %s16, 6
      %s26 = sphi 0, %s28
      %s29 = sphi 0, %s26
      %s30 = sphi 0, %s29
      %s46 = sphi 0, %s30
      %s50 = sphi 0, %s50
      %s52 = sphi 0, %s50
      %s53 = sphi 0, %s52
      %s67 = sphi 0, %s53
      %s71 = sphi 0, %s71
      %s73 = sphi 0, %s71
      %s74 = sphi 0, %s73
      %s88 = sphi 0, %s74
      %s92 = sphi 0, %s92
      %s94 = sphi 0, %s92
      %s95 = sphi 0, %s94
      %s109 = sphi 0, %s95
      %s113 = sphi 0, %s113
      %s115 = sphi 0, %s113
      %s116 = sphi 0, %s115
      %s130 = sphi 0, %s116
      %s134 = sphi 0, %s134
      %s136 = sphi 0, %s134
      %s137 = sphi 0, %s136
      %s151 = sphi 0, %s137
      %s155 = sphi 0, %s155
      %s157 = sphi 0, %s155
      %s158 = sphi 0, %s157
      %s172 = sphi 0, %s158
      %s178 = sphi 0, %s180
      %s181 = sphi 0, %s178
      %s182 = sphi 0, %s181
      %s198 = sphi 0, %s182
    $region4: #{tpu_custom_call.1} parent=1 // loop_header_branch
      %19 = sbr.rel (%p17) target = $region8
    $region5: #{tpu_custom_call.1} parent=1 // loop_body
      %s21 = ssub.s32 %s16, 1
      %s22 = ssub.s32 %s16, 2
      %s23 = sadd.s32 %s16, 1
      %s24 = ssub.s32 %s16, %s23
      %p25 = scmp.eq.s32.totalorder %s24, 0
      %s27 = sadd.s32 %s26, 1
      %s28 = scalar_select %p25, %s26, %s27
      %p31 = pneg %p25
      %p32 = scmp.eq.s32.totalorder %s16, 3
      %p33 = por %p31, %p32
      %p34 = scmp.ne.s32.totalorder %s26, %s29
      %p35 = scmp.eq.s32.totalorder %s16, 0
      %p36 = por %p34, %p35
      %p37 = scmp.ne.s32.totalorder %s26, %s29
      %p38 = scmp.eq.s32.totalorder %s21, 3
      %p39 = por %p37, %p38
      %p40 = scmp.ne.s32.totalorder %s29, %s30
      %p41 = scmp.eq.s32.totalorder %s21, 0
      %p42 = por %p40, %p41
      %p43 = scmp.ne.s32.totalorder %s29, %s30
      %p44 = scmp.eq.s32.totalorder %s22, 3
      %p45 = por %p43, %p44
      %p47 = scmp.ne.s32.totalorder %s30, %s46
      %p48 = scmp.eq.s32.totalorder %s22, 0
      %p49 = por %p47, %p48
      %s51 = sadd.s32 %s50, 1
      %p54 = scmp.eq.s32.totalorder %s16, 3
      %p55 = scmp.ne.s32.totalorder %s50, %s52
      %p56 = scmp.eq.s32.totalorder %s16, 0
      %p57 = por %p55, %p56
      %p58 = scmp.ne.s32.totalorder %s50, %s52
      %p59 = scmp.eq.s32.totalorder %s21, 3
      %p60 = por %p58, %p59
      %p61 = scmp.ne.s32.totalorder %s52, %s53
      %p62 = scmp.eq.s32.totalorder %s21, 0
      %p63 = por %p61, %p62
      %p64 = scmp.ne.s32.totalorder %s52, %s53
      %p65 = scmp.eq.s32.totalorder %s22, 3
      %p66 = por %p64, %p65
      %p68 = scmp.ne.s32.totalorder %s53, %s67
      %p69 = scmp.eq.s32.totalorder %s22, 0
      %p70 = por %p68, %p69
      %s72 = sadd.s32 %s71, 1
      %p75 = scmp.eq.s32.totalorder %s16, 3
      %p76 = scmp.ne.s32.totalorder %s71, %s73
      %p77 = scmp.eq.s32.totalorder %s16, 0
      %p78 = por %p76, %p77
      %p79 = scmp.ne.s32.totalorder %s71, %s73
      %p80 = scmp.eq.s32.totalorder %s21, 3
      %p81 = por %p79, %p80
      %p82 = scmp.ne.s32.totalorder %s73, %s74
      %p83 = scmp.eq.s32.totalorder %s21, 0
      %p84 = por %p82, %p83
      %p85 = scmp.ne.s32.totalorder %s73, %s74
      %p86 = scmp.eq.s32.totalorder %s22, 3
      %p87 = por %p85, %p86
      %p89 = scmp.ne.s32.totalorder %s74, %s88
      %p90 = scmp.eq.s32.totalorder %s22, 0
      %p91 = por %p89, %p90
      %s93 = sadd.s32 %s92, 1
      %p96 = scmp.eq.s32.totalorder %s16, 3
      %p97 = scmp.ne.s32.totalorder %s92, %s94
      %p98 = scmp.eq.s32.totalorder %s16, 0
      %p99 = por %p97, %p98
      %p100 = scmp.ne.s32.totalorder %s92, %s94
      %p101 = scmp.eq.s32.totalorder %s21, 3
      %p102 = por %p100, %p101
      %p103 = scmp.ne.s32.totalorder %s94, %s95
      %p104 = scmp.eq.s32.totalorder %s21, 0
      %p105 = por %p103, %p104
      %p106 = scmp.ne.s32.totalorder %s94, %s95
      %p107 = scmp.eq.s32.totalorder %s22, 3
      %p108 = por %p106, %p107
      %p110 = scmp.ne.s32.totalorder %s95, %s109
      %p111 = scmp.eq.s32.totalorder %s22, 0
      %p112 = por %p110, %p111
      %s114 = sadd.s32 %s113, 1
      %p117 = scmp.eq.s32.totalorder %s16, 3
      %p118 = scmp.ne.s32.totalorder %s113, %s115
      %p119 = scmp.eq.s32.totalorder %s16, 0
      %p120 = por %p118, %p119
      %p121 = scmp.ne.s32.totalorder %s113, %s115
      %p122 = scmp.eq.s32.totalorder %s21, 3
      %p123 = por %p121, %p122
      %p124 = scmp.ne.s32.totalorder %s115, %s116
      %p125 = scmp.eq.s32.totalorder %s21, 0
      %p126 = por %p124, %p125
      %p127 = scmp.ne.s32.totalorder %s115, %s116
      %p128 = scmp.eq.s32.totalorder %s22, 3
      %p129 = por %p127, %p128
      %p131 = scmp.ne.s32.totalorder %s116, %s130
      %p132 = scmp.eq.s32.totalorder %s22, 0
      %p133 = por %p131, %p132
      %s135 = sadd.s32 %s134, 1
      %p138 = scmp.eq.s32.totalorder %s16, 3
      %p139 = scmp.ne.s32.totalorder %s134, %s136
      %p140 = scmp.eq.s32.totalorder %s16, 0
      %p141 = por %p139, %p140
      %p142 = scmp.ne.s32.totalorder %s134, %s136
      %p143 = scmp.eq.s32.totalorder %s21, 3
      %p144 = por %p142, %p143
      %p145 = scmp.ne.s32.totalorder %s136, %s137
      %p146 = scmp.eq.s32.totalorder %s21, 0
      %p147 = por %p145, %p146
      %p148 = scmp.ne.s32.totalorder %s136, %s137
      %p149 = scmp.eq.s32.totalorder %s22, 3
      %p150 = por %p148, %p149
      %p152 = scmp.ne.s32.totalorder %s137, %s151
      %p153 = scmp.eq.s32.totalorder %s22, 0
      %p154 = por %p152, %p153
      %s156 = sadd.s32 %s155, 1
      %p159 = scmp.eq.s32.totalorder %s16, 3
      %p160 = scmp.ne.s32.totalorder %s155, %s157
      %p161 = scmp.eq.s32.totalorder %s16, 0
      %p162 = por %p160, %p161
      %p163 = scmp.ne.s32.totalorder %s155, %s157
      %p164 = scmp.eq.s32.totalorder %s21, 3
      %p165 = por %p163, %p164
      %p166 = scmp.ne.s32.totalorder %s157, %s158
      %p167 = scmp.eq.s32.totalorder %s21, 0
      %p168 = por %p166, %p167
      %p169 = scmp.ne.s32.totalorder %s157, %s158
      %p170 = scmp.eq.s32.totalorder %s22, 3
      %p171 = por %p169, %p170
      %p173 = scmp.ne.s32.totalorder %s158, %s172
      %p174 = scmp.eq.s32.totalorder %s22, 0
      %p175 = por %p173, %p174
      %s176 = ssub.s32 %s16, %s23
      %p177 = scmp.eq.s32.totalorder %s176, 0
      %s179 = sadd.s32 %s178, 1
      %s180 = scalar_select %p177, %s178, %s179
      %p183 = pneg %p177
      %p184 = scmp.eq.s32.totalorder %s16, 3
      %p185 = por %p183, %p184
      %p186 = scmp.ne.s32.totalorder %s178, %s181
      %p187 = scmp.eq.s32.totalorder %s16, 0
      %p188 = por %p186, %p187
      %p189 = scmp.ne.s32.totalorder %s178, %s181
      %p190 = scmp.eq.s32.totalorder %s21, 3
      %p191 = por %p189, %p190
      %p192 = scmp.ne.s32.totalorder %s181, %s182
      %p193 = scmp.eq.s32.totalorder %s21, 0
      %p194 = por %p192, %p193
      %p195 = scmp.ne.s32.totalorder %s181, %s182
      %p196 = scmp.eq.s32.totalorder %s22, 3
      %p197 = por %p195, %p196
      %p199 = scmp.ne.s32.totalorder %s182, %s198
      %p200 = scmp.eq.s32.totalorder %s22, 0
      %p201 = por %p199, %p200
      %p202 = scmp.le.s32.totalorder 1, %s16
      %p203 = scmp.lt.s32.totalorder %s16, 5
      %p204 = pnand %p202, %p203
      %p205 = pneg %p204
      // Predicated region
      $region9: #{tpu_custom_call.1} parent=5 // pred_check
        _
      $region10: #{tpu_custom_call.1} parent=5 // pred_check_branch
        %207 = sbr.rel (%p204) target = $region12
      $region11: #{tpu_custom_call.1} parent=5 // pred_region
        %s208 = ssub.s32 %s16, 1
        // Predicated region
        $region13: #{tpu_custom_call.1} parent=11 // pred_check
          %p209 = pneg %p63
        $region14: #{tpu_custom_call.1} parent=11 // pred_check_branch
          %211 = sbr.rel (%p209) target = $region16
        $region15: #{tpu_custom_call.1} parent=11 // pred_region
          %s213 = ssub.s32 4096, 4096
          %214 = vsyncadd [#allocation4], %s213
          %s215 = sshll.u32 [#allocation3], 4
          %s216 = int_to_ptr.vmem [resolvable:$true] %s215
          %221 = dma.hbm_to_vmem [thread:$0]  %s1, 4096, %s216, [#allocation4], 256, 256, 16
        $region16: #{tpu_custom_call.1} parent=11 // pred_fallthru
          _
        // Predicated region
        $region17: #{tpu_custom_call.1} parent=11 // pred_check
          %p222 = pneg %p84
        $region18: #{tpu_custom_call.1} parent=11 // pred_check_branch
          %224 = sbr.rel (%p222) target = $region20
        $region19: #{tpu_custom_call.1} parent=11 // pred_region
          _
        $region20: #{tpu_custom_call.1} parent=11 // pred_fallthru
          _
        // Predicated region
        $region21: #{tpu_custom_call.1} parent=11 // pred_check
          %p225 = pneg %p105
        $region22: #{tpu_custom_call.1} parent=11 // pred_check_branch
          %227 = sbr.rel (%p225) target = $region24
        $region23: #{tpu_custom_call.1} parent=11 // pred_region
          %s229 = ssub.s32 4096, 4096
          %230 = vsyncadd [#allocation6], %s229
          %s231 = sshll.u32 [#allocation5], 4
          %s232 = int_to_ptr.vmem [resolvable:$true] %s231
          %237 = dma.hbm_to_vmem [thread:$0]  %s3, 4096, %s232, [#allocation6], 128, 128, 8
        $region24: #{tpu_custom_call.1} parent=11 // pred_fallthru
          _
        // Predicated region
        $region25: #{tpu_custom_call.1} parent=11 // pred_check
          %p238 = pneg %p126
        $region26: #{tpu_custom_call.1} parent=11 // pred_check_branch
          %240 = sbr.rel (%p238) target = $region28
        $region27: #{tpu_custom_call.1} parent=11 // pred_region
          _
        $region28: #{tpu_custom_call.1} parent=11 // pred_fallthru
          _
        // Predicated region
        $region29: #{tpu_custom_call.1} parent=11 // pred_check
          %p241 = pneg %p147
        $region30: #{tpu_custom_call.1} parent=11 // pred_check_branch
          %243 = sbr.rel (%p241) target = $region32
        $region31: #{tpu_custom_call.1} parent=11 // pred_region
          _
        $region32: #{tpu_custom_call.1} parent=11 // pred_fallthru
          _
        // Predicated region
        $region33: #{tpu_custom_call.1} parent=11 // pred_check
          %p244 = pneg %p168
        $region34: #{tpu_custom_call.1} parent=11 // pred_check_branch
          %246 = sbr.rel (%p244) target = $region36
        $region35: #{tpu_custom_call.1} parent=11 // pred_region
          _
        $region36: #{tpu_custom_call.1} parent=11 // pred_fallthru
          _
      $region12: #{tpu_custom_call.1} parent=5 // pred_fallthru
        _
      %p247 = scmp.lt.s32.totalorder %s16, 4
      // Predicated region
      $region37: #{tpu_custom_call.1} parent=5 // pred_check
        %p248 = pneg %p247
      $region38: #{tpu_custom_call.1} parent=5 // pred_check_branch
        %250 = sbr.rel (%p248) target = $region40
      $region39: #{tpu_custom_call.1} parent=5 // pred_region
        // Predicated region
        $region41: #{tpu_custom_call.1} parent=39 // pred_check
          %p251 = pneg %p36
        $region42: #{tpu_custom_call.1} parent=39 // pred_check_branch
          %253 = sbr.rel (%p251) target = $region44
        $region43: #{tpu_custom_call.1} parent=39 // pred_region
          %s254 = smul.u32 2, %s16
          %p255 = scmp.lt.s32.totalorder %s254, 7
          %s256 = scalar_select %p255, %s254, 7
          %s257 = smul.addr %s256, 8
          %s258 = scalar_lea.vmem %s0, %s257
          %s259 = smul.u32 2, %s16
        $region44: #{tpu_custom_call.1} parent=39 // pred_fallthru
          _
      $region40: #{tpu_custom_call.1} parent=5 // pred_fallthru
        _
      %p260 = scmp.le.s32.totalorder 1, %s16
      %p261 = scmp.lt.s32.totalorder %s16, 5
      %p262 = pnand %p260, %p261
      %p263 = pneg %p262
      // Predicated region
      $region45: #{tpu_custom_call.1} parent=5 // pred_check
        _
      $region46: #{tpu_custom_call.1} parent=5 // pred_check_branch
        %265 = sbr.rel (%p262) target = $region48
      $region47: #{tpu_custom_call.1} parent=5 // pred_region
        %s266 = ssub.s32 %s16, 1
        // Predicated region
        $region49: #{tpu_custom_call.1} parent=47 // pred_check
          %p267 = pneg %p63
        $region50: #{tpu_custom_call.1} parent=47 // pred_check_branch
          %269 = sbr.rel (%p267) target = $region52
        $region51: #{tpu_custom_call.1} parent=47 // pred_region
          %270 = dma.done [#allocation4], 4096
        $region52: #{tpu_custom_call.1} parent=47 // pred_fallthru
          _
        // Predicated region
        $region53: #{tpu_custom_call.1} parent=47 // pred_check
          %p271 = pneg %p105
        $region54: #{tpu_custom_call.1} parent=47 // pred_check_branch
          %273 = sbr.rel (%p271) target = $region56
        $region55: #{tpu_custom_call.1} parent=47 // pred_region
          %274 = dma.done [#allocation6], 4096
        $region56: #{tpu_custom_call.1} parent=47 // pred_fallthru
          _
        %s275 = smul.u32 2, %s21
        %p276 = scmp.lt.s32.totalorder %s275, 7
        %s277 = scalar_select %p276, %s275, 7
        %s278 = smul.addr %s277, 8
        %s279 = scalar_lea.vmem %s0, %s278
        %p280 = pneg %p42
        %p281 = pneg %p39
        %p282 = pneg %p63
        %p283 = pneg %p60
        %p284 = pneg %p84
        %p285 = pneg %p81
        %p286 = pneg %p105
        %p287 = pneg %p102
        %p288 = pneg %p126
        %p289 = pneg %p123
        %p290 = pneg %p147
        %p291 = pneg %p144
        %p292 = pneg %p168
        %p293 = pneg %p165
        %p294 = pneg %p194
        %p295 = pneg %p191
        %s296 = smul.u32 2, %s21
        %p297 = scmp.lt.s32.totalorder %s296, 7
        %s298 = scalar_select %p297, %s296, 7
        %s299 = smul.addr %s298, 8
        %s300 = scalar_lea.vmem %s7, %s299
        %s301 = smul.u32 2, %s21
        %p302 = scmp.lt.s32.totalorder %s301, 7
        %s303 = scalar_select %p302, %s301, 7
        %s304 = smul.addr %s303, 8
        %s305 = scalar_lea.vmem %s0, %s304
        %s306 = smul.u32 2, %s21
        %s307 = smul.u32 2, %s21
        %p308 = scmp.lt.s32.totalorder %s307, 7
        %s309 = scalar_select %p308, %s307, 7
        %s310 = smul.addr %s309, 8
        %s311 = scalar_lea.vmem %s7, %s310
        %s312 = smul.u32 2, %s21
        %v313 = vld [vmem:[%s305] sm:$0xff]
        %v314 = vld [vmem:[%s305 + $0x8] sm:$0xff]
        %v315 = vld [vmem:[#allocation3] sm:$0xff]
        %v316 = vld [vmem:[#allocation3 + $0x8] sm:$0xff]
        %v317 = vld [vmem:[#allocation3 + $0x10] sm:$0xff]
        %v318 = vld [vmem:[#allocation3 + $0x18] sm:$0xff]
        %v319 = vld [vmem:[#allocation3 + $0x20] sm:$0xff]
        %v320 = vld [vmem:[#allocation3 + $0x28] sm:$0xff]
        %v321 = vld [vmem:[#allocation3 + $0x30] sm:$0xff]
        %v322 = vld [vmem:[#allocation3 + $0x38] sm:$0xff]
        %v323 = vld [vmem:[#allocation3 + $0x40] sm:$0xff]
        %v324 = vld [vmem:[#allocation3 + $0x48] sm:$0xff]
        %v325 = vld [vmem:[#allocation3 + $0x50] sm:$0xff]
        %v326 = vld [vmem:[#allocation3 + $0x58] sm:$0xff]
        %v327 = vld [vmem:[#allocation3 + $0x60] sm:$0xff]
        %v328 = vld [vmem:[#allocation3 + $0x68] sm:$0xff]
        %v329 = vld [vmem:[#allocation3 + $0x70] sm:$0xff]
        %v330 = vld [vmem:[#allocation3 + $0x78] sm:$0xff]
        %v331 = vld [vmem:[#allocation3 + $0x80] sm:$0xff]
        %v332 = vld [vmem:[#allocation3 + $0x88] sm:$0xff]
        %v333 = vld [vmem:[#allocation3 + $0x90] sm:$0xff]
        %v334 = vld [vmem:[#allocation3 + $0x98] sm:$0xff]
        %v335 = vld [vmem:[#allocation3 + $0xa0] sm:$0xff]
        %v336 = vld [vmem:[#allocation3 + $0xa8] sm:$0xff]
        %v337 = vld [vmem:[#allocation3 + $0xb0] sm:$0xff]
        %v338 = vld [vmem:[#allocation3 + $0xb8] sm:$0xff]
        %v339 = vld [vmem:[#allocation3 + $0xc0] sm:$0xff]
        %v340 = vld [vmem:[#allocation3 + $0xc8] sm:$0xff]
        %v341 = vld [vmem:[#allocation3 + $0xd0] sm:$0xff]
        %v342 = vld [vmem:[#allocation3 + $0xd8] sm:$0xff]
        %v343 = vld [vmem:[#allocation3 + $0xe0] sm:$0xff]
        %v344 = vld [vmem:[#allocation3 + $0xe8] sm:$0xff]
        %v345 = vld [vmem:[#allocation3 + $0xf0] sm:$0xff]
        %v346 = vld [vmem:[#allocation3 + $0xf8] sm:$0xff]
        %v347 = vld [vmem:[%s2] sm:$0x3]
        %v349 = vlaneseq
        %v350 = vshrl.u32 %v349, 7
        %v351 = vsub.s32 0, %v350
        %v352 = vrot.slane %v347, %v351
        %v353 = vlaneseq
        %v354 = vshrl.u32 %v353, 7
        %v355 = vsub.s32 1, %v354
        %v356 = vrot.slane %v347, %v355
        %v359 = vand.u32 %v316, 4294901760
        %360 = vmatprep.subr.mxu0 %v359
        %v361 = vand.u32 %v315, 4294901760
        %362 = vmatpush1.msra.mxu0 %v361
        %v363 = vand.u32 %v318, 4294901760
        %364 = vmatprep.subr.mxu0 %v363
        %v365 = vand.u32 %v317, 4294901760
        %366 = vmatpush1.msra.mxu0 %v365
        %v367 = vand.u32 %v320, 4294901760
        %368 = vmatprep.subr.mxu0 %v367
        %v369 = vand.u32 %v319, 4294901760
        %370 = vmatpush1.msra.mxu0 %v369
        %v371 = vand.u32 %v322, 4294901760
        %372 = vmatprep.subr.mxu0 %v371
        %v373 = vand.u32 %v321, 4294901760
        %374 = vmatpush1.msra.mxu0 %v373
        %v375 = vand.u32 %v324, 4294901760
        %376 = vmatprep.subr.mxu0 %v375
        %v377 = vand.u32 %v323, 4294901760
        %378 = vmatpush1.msra.mxu0 %v377
        %v379 = vand.u32 %v326, 4294901760
        %380 = vmatprep.subr.mxu0 %v379
        %v381 = vand.u32 %v325, 4294901760
        %382 = vmatpush1.msra.mxu0 %v381
        %v383 = vand.u32 %v328, 4294901760
        %384 = vmatprep.subr.mxu0 %v383
        %v385 = vand.u32 %v327, 4294901760
        %386 = vmatpush1.msra.mxu0 %v385
        %v387 = vand.u32 %v330, 4294901760
        %388 = vmatprep.subr.mxu0 %v387
        %v389 = vand.u32 %v329, 4294901760
        %390 = vmatpush1.msra.mxu0 %v389
        %v391 = vand.u32 %v332, 4294901760
        %392 = vmatprep.subr.mxu0 %v391
        %v393 = vand.u32 %v331, 4294901760
        %394 = vmatpush1.msra.mxu0 %v393
        %v395 = vand.u32 %v334, 4294901760
        %396 = vmatprep.subr.mxu0 %v395
        %v397 = vand.u32 %v333, 4294901760
        %398 = vmatpush1.msra.mxu0 %v397
        %v399 = vand.u32 %v336, 4294901760
        %400 = vmatprep.subr.mxu0 %v399
        %v401 = vand.u32 %v335, 4294901760
        %402 = vmatpush1.msra.mxu0 %v401
        %v403 = vand.u32 %v338, 4294901760
        %404 = vmatprep.subr.mxu0 %v403
        %v405 = vand.u32 %v337, 4294901760
        %406 = vmatpush1.msra.mxu0 %v405
        %v407 = vand.u32 %v340, 4294901760
        %408 = vmatprep.subr.mxu0 %v407
        %v409 = vand.u32 %v339, 4294901760
        %410 = vmatpush1.msra.mxu0 %v409
        %v411 = vand.u32 %v342, 4294901760
        %412 = vmatprep.subr.mxu0 %v411
        %v413 = vand.u32 %v341, 4294901760
        %414 = vmatpush1.msra.mxu0 %v413
        %v415 = vand.u32 %v344, 4294901760
        %416 = vmatprep.subr.mxu0 %v415
        %v417 = vand.u32 %v343, 4294901760
        %418 = vmatpush1.msra.mxu0 %v417
        %v419 = vand.u32 %v346, 4294901760
        %420 = vmatprep.subr.mxu0 %v419
        %v421 = vand.u32 %v345, 4294901760
        %422 = vmatpush1.msra.mxu0 %v421
        %423 = vmatprep.subr.mxu0 0.0
        %424 = vmatpush1.msra.mxu0 0.0
        %425 = vmatprep.subr.mxu0 0.0
        %426 = vmatpush1.msra.mxu0 0.0
        %427 = vmatprep.subr.mxu0 0.0
        %428 = vmatpush1.msra.mxu0 0.0
        %429 = vmatprep.subr.mxu0 0.0
        %430 = vmatpush1.msra.mxu0 0.0
        %431 = vmatprep.subr.mxu0 0.0
        %432 = vmatpush1.msra.mxu0 0.0
        %433 = vmatprep.subr.mxu0 0.0
        %434 = vmatpush1.msra.mxu0 0.0
        %435 = vmatprep.subr.mxu0 0.0
        %436 = vmatpush1.msra.mxu0 0.0
        %437 = vmatprep.subr.mxu0 0.0
        %438 = vmatpush1.msra.mxu0 0.0
        %439 = vmatprep.subr.mxu0 0.0
        %440 = vmatpush1.msra.mxu0 0.0
        %441 = vmatprep.subr.mxu0 0.0
        %442 = vmatpush1.msra.mxu0 0.0
        %443 = vmatprep.subr.mxu0 0.0
        %444 = vmatpush1.msra.mxu0 0.0
        %445 = vmatprep.subr.mxu0 0.0
        %446 = vmatpush1.msra.mxu0 0.0
        %447 = vmatprep.subr.mxu0 0.0
        %448 = vmatpush1.msra.mxu0 0.0
        %449 = vmatprep.subr.mxu0 0.0
        %450 = vmatpush1.msra.mxu0 0.0
        %451 = vmatprep.subr.mxu0 0.0
        %452 = vmatpush1.msra.mxu0 0.0
        %453 = vmatprep.subr.mxu0 0.0
        %454 = vmatpush1.msra.mxu0 0.0
        %455 = vmatprep.mubr.f32.mxu0 0.0
        %v456 = vand.u32 %v313, 4294901760
        %v457 = vsub.f32 %v313, %v456
        %v458 = vand.u32 %v457, 4294901760
        %v459 = vsub.f32 %v457, %v458
        %v460 = vand.u32 %v459, 4294901760
        %461 = vmatmul.mubr.f32.gmra.mrb[0].mxu0 %v460
        %v462 = vpop.f32.mrb[0].mxu0
        %v463 = vadd.f32 %v352, %v462
        %v464 = vpop.f32.mrb[0].mxu0
        %v465 = vadd.f32 %v356, %v464
        %466 = vmatprep.mubr.f32.mxu0 0.0
        %v467 = vand.u32 %v314, 4294901760
        %v468 = vsub.f32 %v314, %v467
        %v469 = vand.u32 %v468, 4294901760
        %v470 = vsub.f32 %v468, %v469
        %v471 = vand.u32 %v470, 4294901760
        %472 = vmatmul.mubr.f32.gmra.mrb[0].mxu0 %v471
        %v473 = vpop.f32.mrb[0].mxu0
        %v474 = vadd.f32 %v352, %v473
        %v475 = vpop.f32.mrb[0].mxu0
        %v476 = vadd.f32 %v356, %v475
        %477 = vdwg.mxu0
        %v478 = vand.u32 %v316, 4294901760
        %v479 = vsub.f32 %v316, %v478
        %v480 = vand.u32 %v479, 4294901760
        %v481 = vsub.f32 %v479, %v480
        %v482 = vand.u32 %v481, 4294901760
        %483 = vmatprep.subr.mxu0 %v482
        %v484 = vand.u32 %v315, 4294901760
        %v485 = vsub.f32 %v315, %v484
        %v486 = vand.u32 %v485, 4294901760
        %v487 = vsub.f32 %v485, %v486
        %v488 = vand.u32 %v487, 4294901760
        %489 = vmatpush1.msra.mxu0 %v488
        %v490 = vand.u32 %v318, 4294901760
        %v491 = vsub.f32 %v318, %v490
        %v492 = vand.u32 %v491, 4294901760
        %v493 = vsub.f32 %v491, %v492
        %v494 = vand.u32 %v493, 4294901760
        %495 = vmatprep.subr.mxu0 %v494
        %v496 = vand.u32 %v317, 4294901760
        %v497 = vsub.f32 %v317, %v496
        %v498 = vand.u32 %v497, 4294901760
        %v499 = vsub.f32 %v497, %v498
        %v500 = vand.u32 %v499, 4294901760
        %501 = vmatpush1.msra.mxu0 %v500
        %v502 = vand.u32 %v320, 4294901760
        %v503 = vsub.f32 %v320, %v502
        %v504 = vand.u32 %v503, 4294901760
        %v505 = vsub.f32 %v503, %v504
        %v506 = vand.u32 %v505, 4294901760
        %507 = vmatprep.subr.mxu0 %v506
        %v508 = vand.u32 %v319, 4294901760
        %v509 = vsub.f32 %v319, %v508
        %v510 = vand.u32 %v509, 4294901760
        %v511 = vsub.f32 %v509, %v510
        %v512 = vand.u32 %v511, 4294901760
        %513 = vmatpush1.msra.mxu0 %v512
        %v514 = vand.u32 %v322, 4294901760
        %v515 = vsub.f32 %v322, %v514
        %v516 = vand.u32 %v515, 4294901760
        %v517 = vsub.f32 %v515, %v516
        %v518 = vand.u32 %v517, 4294901760
        %519 = vmatprep.subr.mxu0 %v518
        %v520 = vand.u32 %v321, 4294901760
        %v521 = vsub.f32 %v321, %v520
        %v522 = vand.u32 %v521, 4294901760
        %v523 = vsub.f32 %v521, %v522
        %v524 = vand.u32 %v523, 4294901760
        %525 = vmatpush1.msra.mxu0 %v524
        %v526 = vand.u32 %v324, 4294901760
        %v527 = vsub.f32 %v324, %v526
        %v528 = vand.u32 %v527, 4294901760
        %v529 = vsub.f32 %v527, %v528
        %v530 = vand.u32 %v529, 4294901760
        %531 = vmatprep.subr.mxu0 %v530
        %v532 = vand.u32 %v323, 4294901760
        %v533 = vsub.f32 %v323, %v532
        %v534 = vand.u32 %v533, 4294901760
        %v535 = vsub.f32 %v533, %v534
        %v536 = vand.u32 %v535, 4294901760
        %537 = vmatpush1.msra.mxu0 %v536
        %v538 = vand.u32 %v326, 4294901760
        %v539 = vsub.f32 %v326, %v538
        %v540 = vand.u32 %v539, 4294901760
        %v541 = vsub.f32 %v539, %v540
        %v542 = vand.u32 %v541, 4294901760
        %543 = vmatprep.subr.mxu0 %v542
        %v544 = vand.u32 %v325, 4294901760
        %v545 = vsub.f32 %v325, %v544
        %v546 = vand.u32 %v545, 4294901760
        %v547 = vsub.f32 %v545, %v546
        %v548 = vand.u32 %v547, 4294901760
        %549 = vmatpush1.msra.mxu0 %v548
        %v550 = vand.u32 %v328, 4294901760
        %v551 = vsub.f32 %v328, %v550
        %v552 = vand.u32 %v551, 4294901760
        %v553 = vsub.f32 %v551, %v552
        %v554 = vand.u32 %v553, 4294901760
        %555 = vmatprep.subr.mxu0 %v554
        %v556 = vand.u32 %v327, 4294901760
        %v557 = vsub.f32 %v327, %v556
        %v558 = vand.u32 %v557, 4294901760
        %v559 = vsub.f32 %v557, %v558
        %v560 = vand.u32 %v559, 4294901760
        %561 = vmatpush1.msra.mxu0 %v560
        %v562 = vand.u32 %v330, 4294901760
        %v563 = vsub.f32 %v330, %v562
        %v564 = vand.u32 %v563, 4294901760
        %v565 = vsub.f32 %v563, %v564
        %v566 = vand.u32 %v565, 4294901760
        %567 = vmatprep.subr.mxu0 %v566
        %v568 = vand.u32 %v329, 4294901760
        %v569 = vsub.f32 %v329, %v568
        %v570 = vand.u32 %v569, 4294901760
        %v571 = vsub.f32 %v569, %v570
        %v572 = vand.u32 %v571, 4294901760
        %573 = vmatpush1.msra.mxu0 %v572
        %v574 = vand.u32 %v332, 4294901760
        %v575 = vsub.f32 %v332, %v574
        %v576 = vand.u32 %v575, 4294901760
        %v577 = vsub.f32 %v575, %v576
        %v578 = vand.u32 %v577, 4294901760
        %579 = vmatprep.subr.mxu0 %v578
        %v580 = vand.u32 %v331, 4294901760
        %v581 = vsub.f32 %v331, %v580
        %v582 = vand.u32 %v581, 4294901760
        %v583 = vsub.f32 %v581, %v582
        %v584 = vand.u32 %v583, 4294901760
        %585 = vmatpush1.msra.mxu0 %v584
        %v586 = vand.u32 %v334, 4294901760
        %v587 = vsub.f32 %v334, %v586
        %v588 = vand.u32 %v587, 4294901760
        %v589 = vsub.f32 %v587, %v588
        %v590 = vand.u32 %v589, 4294901760
        %591 = vmatprep.subr.mxu0 %v590
        %v592 = vand.u32 %v333, 4294901760
        %v593 = vsub.f32 %v333, %v592
        %v594 = vand.u32 %v593, 4294901760
        %v595 = vsub.f32 %v593, %v594
        %v596 = vand.u32 %v595, 4294901760
        %597 = vmatpush1.msra.mxu0 %v596
        %v598 = vand.u32 %v336, 4294901760
        %v599 = vsub.f32 %v336, %v598
        %v600 = vand.u32 %v599, 4294901760
        %v601 = vsub.f32 %v599, %v600
        %v602 = vand.u32 %v601, 4294901760
        %603 = vmatprep.subr.mxu0 %v602
        %v604 = vand.u32 %v335, 4294901760
        %v605 = vsub.f32 %v335, %v604
        %v606 = vand.u32 %v605, 4294901760
        %v607 = vsub.f32 %v605, %v606
        %v608 = vand.u32 %v607, 4294901760
        %609 = vmatpush1.msra.mxu0 %v608
        %v610 = vand.u32 %v338, 4294901760
        %v611 = vsub.f32 %v338, %v610
        %v612 = vand.u32 %v611, 4294901760
        %v613 = vsub.f32 %v611, %v612
        %v614 = vand.u32 %v613, 4294901760
        %615 = vmatprep.subr.mxu0 %v614
        %v616 = vand.u32 %v337, 4294901760
        %v617 = vsub.f32 %v337, %v616
        %v618 = vand.u32 %v617, 4294901760
        %v619 = vsub.f32 %v617, %v618
        %v620 = vand.u32 %v619, 4294901760
        %621 = vmatpush1.msra.mxu0 %v620
        %v622 = vand.u32 %v340, 4294901760
        %v623 = vsub.f32 %v340, %v622
        %v624 = vand.u32 %v623, 4294901760
        %v625 = vsub.f32 %v623, %v624
        %v626 = vand.u32 %v625, 4294901760
        %627 = vmatprep.subr.mxu0 %v626
        %v628 = vand.u32 %v339, 4294901760
        %v629 = vsub.f32 %v339, %v628
        %v630 = vand.u32 %v629, 4294901760
        %v631 = vsub.f32 %v629, %v630
        %v632 = vand.u32 %v631, 4294901760
        %633 = vmatpush1.msra.mxu0 %v632
        %v634 = vand.u32 %v342, 4294901760
        %v635 = vsub.f32 %v342, %v634
        %v636 = vand.u32 %v635, 4294901760
        %v637 = vsub.f32 %v635, %v636
        %v638 = vand.u32 %v637, 4294901760
        %639 = vmatprep.subr.mxu0 %v638
        %v640 = vand.u32 %v341, 4294901760
        %v641 = vsub.f32 %v341, %v640
        %v642 = vand.u32 %v641, 4294901760
        %v643 = vsub.f32 %v641, %v642
        %v644 = vand.u32 %v643, 4294901760
        %645 = vmatpush1.msra.mxu0 %v644
        %v646 = vand.u32 %v344, 4294901760
        %v647 = vsub.f32 %v344, %v646
        %v648 = vand.u32 %v647, 4294901760
        %v649 = vsub.f32 %v647, %v648
        %v650 = vand.u32 %v649, 4294901760
        %651 = vmatprep.subr.mxu0 %v650
        %v652 = vand.u32 %v343, 4294901760
        %v653 = vsub.f32 %v343, %v652
        %v654 = vand.u32 %v653, 4294901760
        %v655 = vsub.f32 %v653, %v654
        %v656 = vand.u32 %v655, 4294901760
        %657 = vmatpush1.msra.mxu0 %v656
        %v658 = vand.u32 %v346, 4294901760
        %v659 = vsub.f32 %v346, %v658
        %v660 = vand.u32 %v659, 4294901760
        %v661 = vsub.f32 %v659, %v660
        %v662 = vand.u32 %v661, 4294901760
        %663 = vmatprep.subr.mxu0 %v662
        %v664 = vand.u32 %v345, 4294901760
        %v665 = vsub.f32 %v345, %v664
        %v666 = vand.u32 %v665, 4294901760
        %v667 = vsub.f32 %v665, %v666
        %v668 = vand.u32 %v667, 4294901760
        %669 = vmatpush1.msra.mxu0 %v668
        %670 = vmatprep.subr.mxu0 0.0
        %671 = vmatpush1.msra.mxu0 0.0
        %672 = vmatprep.subr.mxu0 0.0
        %673 = vmatpush1.msra.mxu0 0.0
        %674 = vmatprep.subr.mxu0 0.0
        %675 = vmatpush1.msra.mxu0 0.0
        %676 = vmatprep.subr.mxu0 0.0
        %677 = vmatpush1.msra.mxu0 0.0
        %678 = vmatprep.subr.mxu0 0.0
        %679 = vmatpush1.msra.mxu0 0.0
        %680 = vmatprep.subr.mxu0 0.0
        %681 = vmatpush1.msra.mxu0 0.0
        %682 = vmatprep.subr.mxu0 0.0
        %683 = vmatpush1.msra.mxu0 0.0
        %684 = vmatprep.subr.mxu0 0.0
        %685 = vmatpush1.msra.mxu0 0.0
        %686 = vmatprep.subr.mxu0 0.0
        %687 = vmatpush1.msra.mxu0 0.0
        %688 = vmatprep.subr.mxu0 0.0
        %689 = vmatpush1.msra.mxu0 0.0
        %690 = vmatprep.subr.mxu0 0.0
        %691 = vmatpush1.msra.mxu0 0.0
        %692 = vmatprep.subr.mxu0 0.0
        %693 = vmatpush1.msra.mxu0 0.0
        %694 = vmatprep.subr.mxu0 0.0
        %695 = vmatpush1.msra.mxu0 0.0
        %696 = vmatprep.subr.mxu0 0.0
        %697 = vmatpush1.msra.mxu0 0.0
        %698 = vmatprep.subr.mxu0 0.0
        %699 = vmatpush1.msra.mxu0 0.0
        %700 = vmatprep.subr.mxu0 0.0
        %701 = vmatpush1.msra.mxu0 0.0
        %702 = vmatprep.mubr.f32.mxu0 0.0
        %v703 = vand.u32 %v313, 4294901760
        %704 = vmatmul.mubr.f32.gmra.mrb[0].mxu0 %v703
        %v705 = vpop.f32.mrb[0].mxu0
        %v706 = vadd.f32 %v463, %v705
        %v707 = vpop.f32.mrb[0].mxu0
        %v708 = vadd.f32 %v465, %v707
        %709 = vmatprep.mubr.f32.mxu0 0.0
        %v710 = vand.u32 %v314, 4294901760
        %711 = vmatmul.mubr.f32.gmra.mrb[0].mxu0 %v710
        %v712 = vpop.f32.mrb[0].mxu0
        %v713 = vadd.f32 %v474, %v712
        %v714 = vpop.f32.mrb[0].mxu0
        %v715 = vadd.f32 %v476, %v714
        %716 = vdwg.mxu0
        %v717 = vand.u32 %v316, 4294901760
        %v718 = vsub.f32 %v316, %v717
        %719 = vmatprep.subr.mxu0 %v718
        %v720 = vand.u32 %v315, 4294901760
        %v721 = vsub.f32 %v315, %v720
        %722 = vmatpush1.msra.mxu0 %v721
        %v723 = vand.u32 %v318, 4294901760
        %v724 = vsub.f32 %v318, %v723
        %725 = vmatprep.subr.mxu0 %v724
        %v726 = vand.u32 %v317, 4294901760
        %v727 = vsub.f32 %v317, %v726
        %728 = vmatpush1.msra.mxu0 %v727
        %v729 = vand.u32 %v320, 4294901760
        %v730 = vsub.f32 %v320, %v729
        %731 = vmatprep.subr.mxu0 %v730
        %v732 = vand.u32 %v319, 4294901760
        %v733 = vsub.f32 %v319, %v732
        %734 = vmatpush1.msra.mxu0 %v733
        %v735 = vand.u32 %v322, 4294901760
        %v736 = vsub.f32 %v322, %v735
        %737 = vmatprep.subr.mxu0 %v736
        %v738 = vand.u32 %v321, 4294901760
        %v739 = vsub.f32 %v321, %v738
        %740 = vmatpush1.msra.mxu0 %v739
        %v741 = vand.u32 %v324, 4294901760
        %v742 = vsub.f32 %v324, %v741
        %743 = vmatprep.subr.mxu0 %v742
        %v744 = vand.u32 %v323, 4294901760
        %v745 = vsub.f32 %v323, %v744
        %746 = vmatpush1.msra.mxu0 %v745
        %v747 = vand.u32 %v326, 4294901760
        %v748 = vsub.f32 %v326, %v747
        %749 = vmatprep.subr.mxu0 %v748
        %v750 = vand.u32 %v325, 4294901760
        %v751 = vsub.f32 %v325, %v750
        %752 = vmatpush1.msra.mxu0 %v751
        %v753 = vand.u32 %v328, 4294901760
        %v754 = vsub.f32 %v328, %v753
        %755 = vmatprep.subr.mxu0 %v754
        %v756 = vand.u32 %v327, 4294901760
        %v757 = vsub.f32 %v327, %v756
        %758 = vmatpush1.msra.mxu0 %v757
        %v759 = vand.u32 %v330, 4294901760
        %v760 = vsub.f32 %v330, %v759
        %761 = vmatprep.subr.mxu0 %v760
        %v762 = vand.u32 %v329, 4294901760
        %v763 = vsub.f32 %v329, %v762
        %764 = vmatpush1.msra.mxu0 %v763
        %v765 = vand.u32 %v332, 4294901760
        %v766 = vsub.f32 %v332, %v765
        %767 = vmatprep.subr.mxu0 %v766
        %v768 = vand.u32 %v331, 4294901760
        %v769 = vsub.f32 %v331, %v768
        %770 = vmatpush1.msra.mxu0 %v769
        %v771 = vand.u32 %v334, 4294901760
        %v772 = vsub.f32 %v334, %v771
        %773 = vmatprep.subr.mxu0 %v772
        %v774 = vand.u32 %v333, 4294901760
        %v775 = vsub.f32 %v333, %v774
        %776 = vmatpush1.msra.mxu0 %v775
        %v777 = vand.u32 %v336, 4294901760
        %v778 = vsub.f32 %v336, %v777
        %779 = vmatprep.subr.mxu0 %v778
        %v780 = vand.u32 %v335, 4294901760
        %v781 = vsub.f32 %v335, %v780
        %782 = vmatpush1.msra.mxu0 %v781
        %v783 = vand.u32 %v338, 4294901760
        %v784 = vsub.f32 %v338, %v783
        %785 = vmatprep.subr.mxu0 %v784
        %v786 = vand.u32 %v337, 4294901760
        %v787 = vsub.f32 %v337, %v786
        %788 = vmatpush1.msra.mxu0 %v787
        %v789 = vand.u32 %v340, 4294901760
        %v790 = vsub.f32 %v340, %v789
        %791 = vmatprep.subr.mxu0 %v790
        %v792 = vand.u32 %v339, 4294901760
        %v793 = vsub.f32 %v339, %v792
        %794 = vmatpush1.msra.mxu0 %v793
        %v795 = vand.u32 %v342, 4294901760
        %v796 = vsub.f32 %v342, %v795
        %797 = vmatprep.subr.mxu0 %v796
        %v798 = vand.u32 %v341, 4294901760
        %v799 = vsub.f32 %v341, %v798
        %800 = vmatpush1.msra.mxu0 %v799
        %v801 = vand.u32 %v344, 4294901760
        %v802 = vsub.f32 %v344, %v801
        %803 = vmatprep.subr.mxu0 %v802
        %v804 = vand.u32 %v343, 4294901760
        %v805 = vsub.f32 %v343, %v804
        %806 = vmatpush1.msra.mxu0 %v805
        %v807 = vand.u32 %v346, 4294901760
        %v808 = vsub.f32 %v346, %v807
        %809 = vmatprep.subr.mxu0 %v808
        %v810 = vand.u32 %v345, 4294901760
        %v811 = vsub.f32 %v345, %v810
        %812 = vmatpush1.msra.mxu0 %v811
        %813 = vmatprep.subr.mxu0 0.0
        %814 = vmatpush1.msra.mxu0 0.0
        %815 = vmatprep.subr.mxu0 0.0
        %816 = vmatpush1.msra.mxu0 0.0
        %817 = vmatprep.subr.mxu0 0.0
        %818 = vmatpush1.msra.mxu0 0.0
        %819 = vmatprep.subr.mxu0 0.0
        %820 = vmatpush1.msra.mxu0 0.0
        %821 = vmatprep.subr.mxu0 0.0
        %822 = vmatpush1.msra.mxu0 0.0
        %823 = vmatprep.subr.mxu0 0.0
        %824 = vmatpush1.msra.mxu0 0.0
        %825 = vmatprep.subr.mxu0 0.0
        %826 = vmatpush1.msra.mxu0 0.0
        %827 = vmatprep.subr.mxu0 0.0
        %828 = vmatpush1.msra.mxu0 0.0
        %829 = vmatprep.subr.mxu0 0.0
        %830 = vmatpush1.msra.mxu0 0.0
        %831 = vmatprep.subr.mxu0 0.0
        %832 = vmatpush1.msra.mxu0 0.0
        %833 = vmatprep.subr.mxu0 0.0
        %834 = vmatpush1.msra.mxu0 0.0
        %835 = vmatprep.subr.mxu0 0.0
        %836 = vmatpush1.msra.mxu0 0.0
        %837 = vmatprep.subr.mxu0 0.0
        %838 = vmatpush1.msra.mxu0 0.0
        %839 = vmatprep.subr.mxu0 0.0
        %840 = vmatpush1.msra.mxu0 0.0
        %841 = vmatprep.subr.mxu0 0.0
        %842 = vmatpush1.msra.mxu0 0.0
        %843 = vmatprep.subr.mxu0 0.0
        %844 = vmatpush1.msra.mxu0 0.0
        %845 = vmatprep.mubr.f32.mxu0 0.0
        %v846 = vand.u32 %v313, 4294901760
        %v847 = vsub.f32 %v313, %v846
        %848 = vmatmul.mubr.f32.gmra.mrb[0].mxu0 %v847
        %v849 = vpop.f32.mrb[0].mxu0
        %v850 = vadd.f32 %v706, %v849
        %v851 = vpop.f32.mrb[0].mxu0
        %v852 = vadd.f32 %v708, %v851
        %853 = vmatprep.mubr.f32.mxu0 0.0
        %v854 = vand.u32 %v314, 4294901760
        %v855 = vsub.f32 %v314, %v854
        %856 = vmatmul.mubr.f32.gmra.mrb[0].mxu0 %v855
        %v857 = vpop.f32.mrb[0].mxu0
        %v858 = vadd.f32 %v713, %v857
        %v859 = vpop.f32.mrb[0].mxu0
        %v860 = vadd.f32 %v715, %v859
        %861 = vdwg.mxu0
        %v862 = vand.u32 %v316, 4294901760
        %863 = vmatprep.subr.mxu0 %v862
        %v864 = vand.u32 %v315, 4294901760
        %865 = vmatpush1.msra.mxu0 %v864
        %v866 = vand.u32 %v318, 4294901760
        %867 = vmatprep.subr.mxu0 %v866
        %v868 = vand.u32 %v317, 4294901760
        %869 = vmatpush1.msra.mxu0 %v868
        %v870 = vand.u32 %v320, 4294901760
        %871 = vmatprep.subr.mxu0 %v870
        %v872 = vand.u32 %v319, 4294901760
        %873 = vmatpush1.msra.mxu0 %v872
        %v874 = vand.u32 %v322, 4294901760
        %875 = vmatprep.subr.mxu0 %v874
        %v876 = vand.u32 %v321, 4294901760
        %877 = vmatpush1.msra.mxu0 %v876
        %v878 = vand.u32 %v324, 4294901760
        %879 = vmatprep.subr.mxu0 %v878
        %v880 = vand.u32 %v323, 4294901760
        %881 = vmatpush1.msra.mxu0 %v880
        %v882 = vand.u32 %v326, 4294901760
        %883 = vmatprep.subr.mxu0 %v882
        %v884 = vand.u32 %v325, 4294901760
        %885 = vmatpush1.msra.mxu0 %v884
        %v886 = vand.u32 %v328, 4294901760
        %887 = vmatprep.subr.mxu0 %v886
        %v888 = vand.u32 %v327, 4294901760
        %889 = vmatpush1.msra.mxu0 %v888
        %v890 = vand.u32 %v330, 4294901760
        %891 = vmatprep.subr.mxu0 %v890
        %v892 = vand.u32 %v329, 4294901760
        %893 = vmatpush1.msra.mxu0 %v892
        %v894 = vand.u32 %v332, 4294901760
        %895 = vmatprep.subr.mxu0 %v894
        %v896 = vand.u32 %v331, 4294901760
        %897 = vmatpush1.msra.mxu0 %v896
        %v898 = vand.u32 %v334, 4294901760
        %899 = vmatprep.subr.mxu0 %v898
        %v900 = vand.u32 %v333, 4294901760
        %901 = vmatpush1.msra.mxu0 %v900
        %v902 = vand.u32 %v336, 4294901760
        %903 = vmatprep.subr.mxu0 %v902
        %v904 = vand.u32 %v335, 4294901760
        %905 = vmatpush1.msra.mxu0 %v904
        %v906 = vand.u32 %v338, 4294901760
        %907 = vmatprep.subr.mxu0 %v906
        %v908 = vand.u32 %v337, 4294901760
        %909 = vmatpush1.msra.mxu0 %v908
        %v910 = vand.u32 %v340, 4294901760
        %911 = vmatprep.subr.mxu0 %v910
        %v912 = vand.u32 %v339, 4294901760
        %913 = vmatpush1.msra.mxu0 %v912
        %v914 = vand.u32 %v342, 4294901760
        %915 = vmatprep.subr.mxu0 %v914
        %v916 = vand.u32 %v341, 4294901760
        %917 = vmatpush1.msra.mxu0 %v916
        %v918 = vand.u32 %v344, 4294901760
        %919 = vmatprep.subr.mxu0 %v918
        %v920 = vand.u32 %v343, 4294901760
        %921 = vmatpush1.msra.mxu0 %v920
        %v922 = vand.u32 %v346, 4294901760
        %923 = vmatprep.subr.mxu0 %v922
        %v924 = vand.u32 %v345, 4294901760
        %925 = vmatpush1.msra.mxu0 %v924
        %926 = vmatprep.subr.mxu0 0.0
        %927 = vmatpush1.msra.mxu0 0.0
        %928 = vmatprep.subr.mxu0 0.0
        %929 = vmatpush1.msra.mxu0 0.0
        %930 = vmatprep.subr.mxu0 0.0
        %931 = vmatpush1.msra.mxu0 0.0
        %932 = vmatprep.subr.mxu0 0.0
        %933 = vmatpush1.msra.mxu0 0.0
        %934 = vmatprep.subr.mxu0 0.0
        %935 = vmatpush1.msra.mxu0 0.0
        %936 = vmatprep.subr.mxu0 0.0
        %937 = vmatpush1.msra.mxu0 0.0
        %938 = vmatprep.subr.mxu0 0.0
        %939 = vmatpush1.msra.mxu0 0.0
        %940 = vmatprep.subr.mxu0 0.0
        %941 = vmatpush1.msra.mxu0 0.0
        %942 = vmatprep.subr.mxu0 0.0
        %943 = vmatpush1.msra.mxu0 0.0
        %944 = vmatprep.subr.mxu0 0.0
        %945 = vmatpush1.msra.mxu0 0.0
        %946 = vmatprep.subr.mxu0 0.0
        %947 = vmatpush1.msra.mxu0 0.0
        %948 = vmatprep.subr.mxu0 0.0
        %949 = vmatpush1.msra.mxu0 0.0
        %950 = vmatprep.subr.mxu0 0.0
        %951 = vmatpush1.msra.mxu0 0.0
        %952 = vmatprep.subr.mxu0 0.0
        %953 = vmatpush1.msra.mxu0 0.0
        %954 = vmatprep.subr.mxu0 0.0
        %955 = vmatpush1.msra.mxu0 0.0
        %956 = vmatprep.subr.mxu0 0.0
        %957 = vmatpush1.msra.mxu0 0.0
        %958 = vmatprep.mubr.f32.mxu0 0.0
        %v959 = vand.u32 %v313, 4294901760
        %v960 = vsub.f32 %v313, %v959
        %v961 = vand.u32 %v960, 4294901760
        %962 = vmatmul.mubr.f32.gmra.mrb[0].mxu0 %v961
        %v963 = vpop.f32.mrb[0].mxu0
        %v964 = vadd.f32 %v850, %v963
        %v965 = vpop.f32.mrb[0].mxu0
        %v966 = vadd.f32 %v852, %v965
        %967 = vmatprep.mubr.f32.mxu0 0.0
        %v968 = vand.u32 %v314, 4294901760
        %v969 = vsub.f32 %v314, %v968
        %v970 = vand.u32 %v969, 4294901760
        %971 = vmatmul.mubr.f32.gmra.mrb[0].mxu0 %v970
        %v972 = vpop.f32.mrb[0].mxu0
        %v973 = vadd.f32 %v858, %v972
        %v974 = vpop.f32.mrb[0].mxu0
        %v975 = vadd.f32 %v860, %v974
        %976 = vdwg.mxu0
        %v977 = vand.u32 %v316, 4294901760
        %v978 = vsub.f32 %v316, %v977
        %v979 = vand.u32 %v978, 4294901760
        %980 = vmatprep.subr.mxu0 %v979
        %v981 = vand.u32 %v315, 4294901760
        %v982 = vsub.f32 %v315, %v981
        %v983 = vand.u32 %v982, 4294901760
        %984 = vmatpush1.msra.mxu0 %v983
        %v985 = vand.u32 %v318, 4294901760
        %v986 = vsub.f32 %v318, %v985
        %v987 = vand.u32 %v986, 4294901760
        %988 = vmatprep.subr.mxu0 %v987
        %v989 = vand.u32 %v317, 4294901760
        %v990 = vsub.f32 %v317, %v989
        %v991 = vand.u32 %v990, 4294901760
        %992 = vmatpush1.msra.mxu0 %v991
        %v993 = vand.u32 %v320, 4294901760
        %v994 = vsub.f32 %v320, %v993
        %v995 = vand.u32 %v994, 4294901760
        %996 = vmatprep.subr.mxu0 %v995
        %v997 = vand.u32 %v319, 4294901760
        %v998 = vsub.f32 %v319, %v997
        %v999 = vand.u32 %v998, 4294901760
        %1000 = vmatpush1.msra.mxu0 %v999
        %v1001 = vand.u32 %v322, 4294901760
        %v1002 = vsub.f32 %v322, %v1001
        %v1003 = vand.u32 %v1002, 4294901760
        %1004 = vmatprep.subr.mxu0 %v1003
        %v1005 = vand.u32 %v321, 4294901760
        %v1006 = vsub.f32 %v321, %v1005
        %v1007 = vand.u32 %v1006, 4294901760
        %1008 = vmatpush1.msra.mxu0 %v1007
        %v1009 = vand.u32 %v324, 4294901760
        %v1010 = vsub.f32 %v324, %v1009
        %v1011 = vand.u32 %v1010, 4294901760
        %1012 = vmatprep.subr.mxu0 %v1011
        %v1013 = vand.u32 %v323, 4294901760
        %v1014 = vsub.f32 %v323, %v1013
        %v1015 = vand.u32 %v1014, 4294901760
        %1016 = vmatpush1.msra.mxu0 %v1015
        %v1017 = vand.u32 %v326, 4294901760
        %v1018 = vsub.f32 %v326, %v1017
        %v1019 = vand.u32 %v1018, 4294901760
        %1020 = vmatprep.subr.mxu0 %v1019
        %v1021 = vand.u32 %v325, 4294901760
        %v1022 = vsub.f32 %v325, %v1021
        %v1023 = vand.u32 %v1022, 4294901760
        %1024 = vmatpush1.msra.mxu0 %v1023
        %v1025 = vand.u32 %v328, 4294901760
        %v1026 = vsub.f32 %v328, %v1025
        %v1027 = vand.u32 %v1026, 4294901760
        %1028 = vmatprep.subr.mxu0 %v1027
        %v1029 = vand.u32 %v327, 4294901760
        %v1030 = vsub.f32 %v327, %v1029
        %v1031 = vand.u32 %v1030, 4294901760
        %1032 = vmatpush1.msra.mxu0 %v1031
        %v1033 = vand.u32 %v330, 4294901760
        %v1034 = vsub.f32 %v330, %v1033
        %v1035 = vand.u32 %v1034, 4294901760
        %1036 = vmatprep.subr.mxu0 %v1035
        %v1037 = vand.u32 %v329, 4294901760
        %v1038 = vsub.f32 %v329, %v1037
        %v1039 = vand.u32 %v1038, 4294901760
        %1040 = vmatpush1.msra.mxu0 %v1039
        %v1041 = vand.u32 %v332, 4294901760
        %v1042 = vsub.f32 %v332, %v1041
        %v1043 = vand.u32 %v1042, 4294901760
        %1044 = vmatprep.subr.mxu0 %v1043
        %v1045 = vand.u32 %v331, 4294901760
        %v1046 = vsub.f32 %v331, %v1045
        %v1047 = vand.u32 %v1046, 4294901760
        %1048 = vmatpush1.msra.mxu0 %v1047
        %v1049 = vand.u32 %v334, 4294901760
        %v1050 = vsub.f32 %v334, %v1049
        %v1051 = vand.u32 %v1050, 4294901760
        %1052 = vmatprep.subr.mxu0 %v1051
        %v1053 = vand.u32 %v333, 4294901760
        %v1054 = vsub.f32 %v333, %v1053
        %v1055 = vand.u32 %v1054, 4294901760
        %1056 = vmatpush1.msra.mxu0 %v1055
        %v1057 = vand.u32 %v336, 4294901760
        %v1058 = vsub.f32 %v336, %v1057
        %v1059 = vand.u32 %v1058, 4294901760
        %1060 = vmatprep.subr.mxu0 %v1059
        %v1061 = vand.u32 %v335, 4294901760
        %v1062 = vsub.f32 %v335, %v1061
        %v1063 = vand.u32 %v1062, 4294901760
        %1064 = vmatpush1.msra.mxu0 %v1063
        %v1065 = vand.u32 %v338, 4294901760
        %v1066 = vsub.f32 %v338, %v1065
        %v1067 = vand.u32 %v1066, 4294901760
        %1068 = vmatprep.subr.mxu0 %v1067
        %v1069 = vand.u32 %v337, 4294901760
        %v1070 = vsub.f32 %v337, %v1069
        %v1071 = vand.u32 %v1070, 4294901760
        %1072 = vmatpush1.msra.mxu0 %v1071
        %v1073 = vand.u32 %v340, 4294901760
        %v1074 = vsub.f32 %v340, %v1073
        %v1075 = vand.u32 %v1074, 4294901760
        %1076 = vmatprep.subr.mxu0 %v1075
        %v1077 = vand.u32 %v339, 4294901760
        %v1078 = vsub.f32 %v339, %v1077
        %v1079 = vand.u32 %v1078, 4294901760
        %1080 = vmatpush1.msra.mxu0 %v1079
        %v1081 = vand.u32 %v342, 4294901760
        %v1082 = vsub.f32 %v342, %v1081
        %v1083 = vand.u32 %v1082, 4294901760
        %1084 = vmatprep.subr.mxu0 %v1083
        %v1085 = vand.u32 %v341, 4294901760
        %v1086 = vsub.f32 %v341, %v1085
        %v1087 = vand.u32 %v1086, 4294901760
        %1088 = vmatpush1.msra.mxu0 %v1087
        %v1089 = vand.u32 %v344, 4294901760
        %v1090 = vsub.f32 %v344, %v1089
        %v1091 = vand.u32 %v1090, 4294901760
        %1092 = vmatprep.subr.mxu0 %v1091
        %v1093 = vand.u32 %v343, 4294901760
        %v1094 = vsub.f32 %v343, %v1093
        %v1095 = vand.u32 %v1094, 4294901760
        %1096 = vmatpush1.msra.mxu0 %v1095
        %v1097 = vand.u32 %v346, 4294901760
        %v1098 = vsub.f32 %v346, %v1097
        %v1099 = vand.u32 %v1098, 4294901760
        %1100 = vmatprep.subr.mxu0 %v1099
        %v1101 = vand.u32 %v345, 4294901760
        %v1102 = vsub.f32 %v345, %v1101
        %v1103 = vand.u32 %v1102, 4294901760
        %1104 = vmatpush1.msra.mxu0 %v1103
        %1105 = vmatprep.subr.mxu0 0.0
        %1106 = vmatpush1.msra.mxu0 0.0
        %1107 = vmatprep.subr.mxu0 0.0
        %1108 = vmatpush1.msra.mxu0 0.0
        %1109 = vmatprep.subr.mxu0 0.0
        %1110 = vmatpush1.msra.mxu0 0.0
        %1111 = vmatprep.subr.mxu0 0.0
        %1112 = vmatpush1.msra.mxu0 0.0
        %1113 = vmatprep.subr.mxu0 0.0
        %1114 = vmatpush1.msra.mxu0 0.0
        %1115 = vmatprep.subr.mxu0 0.0
        %1116 = vmatpush1.msra.mxu0 0.0
        %1117 = vmatprep.subr.mxu0 0.0
        %1118 = vmatpush1.msra.mxu0 0.0
        %1119 = vmatprep.subr.mxu0 0.0
        %1120 = vmatpush1.msra.mxu0 0.0
        %1121 = vmatprep.subr.mxu0 0.0
        %1122 = vmatpush1.msra.mxu0 0.0
        %1123 = vmatprep.subr.mxu0 0.0
        %1124 = vmatpush1.msra.mxu0 0.0
        %1125 = vmatprep.subr.mxu0 0.0
        %1126 = vmatpush1.msra.mxu0 0.0
        %1127 = vmatprep.subr.mxu0 0.0
        %1128 = vmatpush1.msra.mxu0 0.0
        %1129 = vmatprep.subr.mxu0 0.0
        %1130 = vmatpush1.msra.mxu0 0.0
        %1131 = vmatprep.subr.mxu0 0.0
        %1132 = vmatpush1.msra.mxu0 0.0
        %1133 = vmatprep.subr.mxu0 0.0
        %1134 = vmatpush1.msra.mxu0 0.0
        %1135 = vmatprep.subr.mxu0 0.0
        %1136 = vmatpush1.msra.mxu0 0.0
        %1137 = vmatprep.mubr.f32.mxu0 0.0
        %v1138 = vand.u32 %v313, 4294901760
        %1139 = vmatmul.mubr.f32.gmra.mrb[0].mxu0 %v1138
        %v1140 = vpop.f32.mrb[0].mxu0
        %v1141 = vadd.f32 %v964, %v1140
        %v1142 = vpop.f32.mrb[0].mxu0
        %v1143 = vadd.f32 %v966, %v1142
        %1144 = vmatprep.mubr.f32.mxu0 0.0
        %v1145 = vand.u32 %v314, 4294901760
        %1146 = vmatmul.mubr.f32.gmra.mrb[0].mxu0 %v1145
        %v1147 = vpop.f32.mrb[0].mxu0
        %v1148 = vadd.f32 %v973, %v1147
        %v1149 = vpop.f32.mrb[0].mxu0
        %v1150 = vadd.f32 %v975, %v1149
        %1151 = vdwg.mxu0
        %v1152 = vand.u32 %v316, 4294901760
        %1153 = vmatprep.subr.mxu0 %v1152
        %v1154 = vand.u32 %v315, 4294901760
        %1155 = vmatpush1.msra.mxu0 %v1154
        %v1156 = vand.u32 %v318, 4294901760
        %1157 = vmatprep.subr.mxu0 %v1156
        %v1158 = vand.u32 %v317, 4294901760
        %1159 = vmatpush1.msra.mxu0 %v1158
        %v1160 = vand.u32 %v320, 4294901760
        %1161 = vmatprep.subr.mxu0 %v1160
        %v1162 = vand.u32 %v319, 4294901760
        %1163 = vmatpush1.msra.mxu0 %v1162
        %v1164 = vand.u32 %v322, 4294901760
        %1165 = vmatprep.subr.mxu0 %v1164
        %v1166 = vand.u32 %v321, 4294901760
        %1167 = vmatpush1.msra.mxu0 %v1166
        %v1168 = vand.u32 %v324, 4294901760
        %1169 = vmatprep.subr.mxu0 %v1168
        %v1170 = vand.u32 %v323, 4294901760
        %1171 = vmatpush1.msra.mxu0 %v1170
        %v1172 = vand.u32 %v326, 4294901760
        %1173 = vmatprep.subr.mxu0 %v1172
        %v1174 = vand.u32 %v325, 4294901760
        %1175 = vmatpush1.msra.mxu0 %v1174
        %v1176 = vand.u32 %v328, 4294901760
        %1177 = vmatprep.subr.mxu0 %v1176
        %v1178 = vand.u32 %v327, 4294901760
        %1179 = vmatpush1.msra.mxu0 %v1178
        %v1180 = vand.u32 %v330, 4294901760
        %1181 = vmatprep.subr.mxu0 %v1180
        %v1182 = vand.u32 %v329, 4294901760
        %1183 = vmatpush1.msra.mxu0 %v1182
        %v1184 = vand.u32 %v332, 4294901760
        %1185 = vmatprep.subr.mxu0 %v1184
        %v1186 = vand.u32 %v331, 4294901760
        %1187 = vmatpush1.msra.mxu0 %v1186
        %v1188 = vand.u32 %v334, 4294901760
        %1189 = vmatprep.subr.mxu0 %v1188
        %v1190 = vand.u32 %v333, 4294901760
        %1191 = vmatpush1.msra.mxu0 %v1190
        %v1192 = vand.u32 %v336, 4294901760
        %1193 = vmatprep.subr.mxu0 %v1192
        %v1194 = vand.u32 %v335, 4294901760
        %1195 = vmatpush1.msra.mxu0 %v1194
        %v1196 = vand.u32 %v338, 4294901760
        %1197 = vmatprep.subr.mxu0 %v1196
        %v1198 = vand.u32 %v337, 4294901760
        %1199 = vmatpush1.msra.mxu0 %v1198
        %v1200 = vand.u32 %v340, 4294901760
        %1201 = vmatprep.subr.mxu0 %v1200
        %v1202 = vand.u32 %v339, 4294901760
        %1203 = vmatpush1.msra.mxu0 %v1202
        %v1204 = vand.u32 %v342, 4294901760
        %1205 = vmatprep.subr.mxu0 %v1204
        %v1206 = vand.u32 %v341, 4294901760
        %1207 = vmatpush1.msra.mxu0 %v1206
        %v1208 = vand.u32 %v344, 4294901760
        %1209 = vmatprep.subr.mxu0 %v1208
        %v1210 = vand.u32 %v343, 4294901760
        %1211 = vmatpush1.msra.mxu0 %v1210
        %v1212 = vand.u32 %v346, 4294901760
        %1213 = vmatprep.subr.mxu0 %v1212
        %v1214 = vand.u32 %v345, 4294901760
        %1215 = vmatpush1.msra.mxu0 %v1214
        %1216 = vmatprep.subr.mxu0 0.0
        %1217 = vmatpush1.msra.mxu0 0.0
        %1218 = vmatprep.subr.mxu0 0.0
        %1219 = vmatpush1.msra.mxu0 0.0
        %1220 = vmatprep.subr.mxu0 0.0
        %1221 = vmatpush1.msra.mxu0 0.0
        %1222 = vmatprep.subr.mxu0 0.0
        %1223 = vmatpush1.msra.mxu0 0.0
        %1224 = vmatprep.subr.mxu0 0.0
        %1225 = vmatpush1.msra.mxu0 0.0
        %1226 = vmatprep.subr.mxu0 0.0
        %1227 = vmatpush1.msra.mxu0 0.0
        %1228 = vmatprep.subr.mxu0 0.0
        %1229 = vmatpush1.msra.mxu0 0.0
        %1230 = vmatprep.subr.mxu0 0.0
        %1231 = vmatpush1.msra.mxu0 0.0
        %1232 = vmatprep.subr.mxu0 0.0
        %1233 = vmatpush1.msra.mxu0 0.0
        %1234 = vmatprep.subr.mxu0 0.0
        %1235 = vmatpush1.msra.mxu0 0.0
        %1236 = vmatprep.subr.mxu0 0.0
        %1237 = vmatpush1.msra.mxu0 0.0
        %1238 = vmatprep.subr.mxu0 0.0
        %1239 = vmatpush1.msra.mxu0 0.0
        %1240 = vmatprep.subr.mxu0 0.0
        %1241 = vmatpush1.msra.mxu0 0.0
        %1242 = vmatprep.subr.mxu0 0.0
        %1243 = vmatpush1.msra.mxu0 0.0
        %1244 = vmatprep.subr.mxu0 0.0
        %1245 = vmatpush1.msra.mxu0 0.0
        %1246 = vmatprep.subr.mxu0 0.0
        %1247 = vmatpush1.msra.mxu0 0.0
        %1248 = vmatprep.mubr.f32.mxu0 0.0
        %v1249 = vand.u32 %v313, 4294901760
        %1250 = vmatmul.mubr.f32.gmra.mrb[0].mxu0 %v1249
        %v1251 = vpop.f32.mrb[0].mxu0
        %v1252 = vadd.f32 %v1141, %v1251
        %v1253 = vpop.f32.mrb[0].mxu0
        %v1254 = vadd.f32 %v1143, %v1253
        %1255 = vmatprep.mubr.f32.mxu0 0.0
        %v1256 = vand.u32 %v314, 4294901760
        %1257 = vmatmul.mubr.f32.gmra.mrb[0].mxu0 %v1256
        %v1258 = vpop.f32.mrb[0].mxu0
        %v1259 = vadd.f32 %v1148, %v1258
        %v1260 = vpop.f32.mrb[0].mxu0
        %v1261 = vadd.f32 %v1150, %v1260
        %1262 = vdwg.mxu0
        %v1263 = vmax.f32 %v1252, 0.0
        %v1264 = vmax.f32 %v1254, 0.0
        %v1265 = vmax.f32 %v1259, 0.0
        %v1266 = vmax.f32 %v1261, 0.0
        %v1267 = vld [vmem:[#allocation5] sm:$0xff]
        %v1268 = vld [vmem:[#allocation5 + $0x8] sm:$0xff]
        %v1269 = vld [vmem:[#allocation5 + $0x10] sm:$0xff]
        %v1270 = vld [vmem:[#allocation5 + $0x18] sm:$0xff]
        %v1271 = vld [vmem:[#allocation5 + $0x20] sm:$0xff]
        %v1272 = vld [vmem:[#allocation5 + $0x28] sm:$0xff]
        %v1273 = vld [vmem:[#allocation5 + $0x30] sm:$0xff]
        %v1274 = vld [vmem:[#allocation5 + $0x38] sm:$0xff]
        %v1275 = vld [vmem:[#allocation5 + $0x40] sm:$0xff]
        %v1276 = vld [vmem:[#allocation5 + $0x48] sm:$0xff]
        %v1277 = vld [vmem:[#allocation5 + $0x50] sm:$0xff]
        %v1278 = vld [vmem:[#allocation5 + $0x58] sm:$0xff]
        %v1279 = vld [vmem:[#allocation5 + $0x60] sm:$0xff]
        %v1280 = vld [vmem:[#allocation5 + $0x68] sm:$0xff]
        %v1281 = vld [vmem:[#allocation5 + $0x70] sm:$0xff]
        %v1282 = vld [vmem:[#allocation5 + $0x78] sm:$0xff]
        %v1283 = vld [vmem:[#allocation5 + $0x80] sm:$0xff]
        %v1284 = vld [vmem:[#allocation5 + $0x88] sm:$0xff]
        %v1285 = vld [vmem:[#allocation5 + $0x90] sm:$0xff]
        %v1286 = vld [vmem:[#allocation5 + $0x98] sm:$0xff]
        %v1287 = vld [vmem:[#allocation5 + $0xa0] sm:$0xff]
        %v1288 = vld [vmem:[#allocation5 + $0xa8] sm:$0xff]
        %v1289 = vld [vmem:[#allocation5 + $0xb0] sm:$0xff]
        %v1290 = vld [vmem:[#allocation5 + $0xb8] sm:$0xff]
        %v1291 = vld [vmem:[#allocation5 + $0xc0] sm:$0xff]
        %v1292 = vld [vmem:[#allocation5 + $0xc8] sm:$0xff]
        %v1293 = vld [vmem:[#allocation5 + $0xd0] sm:$0xff]
        %v1294 = vld [vmem:[#allocation5 + $0xd8] sm:$0xff]
        %v1295 = vld [vmem:[#allocation5 + $0xe0] sm:$0xff]
        %v1296 = vld [vmem:[#allocation5 + $0xe8] sm:$0xff]
        %v1297 = vld [vmem:[#allocation5 + $0xf0] sm:$0xff]
        %v1298 = vld [vmem:[#allocation5 + $0xf8] sm:$0xff]
        %v1299 = vld [vmem:[%s4] sm:$0x1]
        %v1301 = vlaneseq
        %v1302 = vshrl.u32 %v1301, 7
        %v1303 = vsub.s32 0, %v1302
        %v1304 = vrot.slane %v1299, %v1303
        %1306 = vmatprep.subr.mxu0 0.0
        %v1307 = vand.u32 %v1267, 4294901760
        %1308 = vmatpush1.msra.mxu0 %v1307
        %1309 = vmatprep.subr.mxu0 0.0
        %v1310 = vand.u32 %v1268, 4294901760
        %1311 = vmatpush1.msra.mxu0 %v1310
        %1312 = vmatprep.subr.mxu0 0.0
        %v1313 = vand.u32 %v1269, 4294901760
        %1314 = vmatpush1.msra.mxu0 %v1313
        %1315 = vmatprep.subr.mxu0 0.0
        %v1316 = vand.u32 %v1270, 4294901760
        %1317 = vmatpush1.msra.mxu0 %v1316
        %1318 = vmatprep.subr.mxu0 0.0
        %v1319 = vand.u32 %v1271, 4294901760
        %1320 = vmatpush1.msra.mxu0 %v1319
        %1321 = vmatprep.subr.mxu0 0.0
        %v1322 = vand.u32 %v1272, 4294901760
        %1323 = vmatpush1.msra.mxu0 %v1322
        %1324 = vmatprep.subr.mxu0 0.0
        %v1325 = vand.u32 %v1273, 4294901760
        %1326 = vmatpush1.msra.mxu0 %v1325
        %1327 = vmatprep.subr.mxu0 0.0
        %v1328 = vand.u32 %v1274, 4294901760
        %1329 = vmatpush1.msra.mxu0 %v1328
        %1330 = vmatprep.subr.mxu0 0.0
        %v1331 = vand.u32 %v1275, 4294901760
        %1332 = vmatpush1.msra.mxu0 %v1331
        %1333 = vmatprep.subr.mxu0 0.0
        %v1334 = vand.u32 %v1276, 4294901760
        %1335 = vmatpush1.msra.mxu0 %v1334
        %1336 = vmatprep.subr.mxu0 0.0
        %v1337 = vand.u32 %v1277, 4294901760
        %1338 = vmatpush1.msra.mxu0 %v1337
        %1339 = vmatprep.subr.mxu0 0.0
        %v1340 = vand.u32 %v1278, 4294901760
        %1341 = vmatpush1.msra.mxu0 %v1340
        %1342 = vmatprep.subr.mxu0 0.0
        %v1343 = vand.u32 %v1279, 4294901760
        %1344 = vmatpush1.msra.mxu0 %v1343
        %1345 = vmatprep.subr.mxu0 0.0
        %v1346 = vand.u32 %v1280, 4294901760
        %1347 = vmatpush1.msra.mxu0 %v1346
        %1348 = vmatprep.subr.mxu0 0.0
        %v1349 = vand.u32 %v1281, 4294901760
        %1350 = vmatpush1.msra.mxu0 %v1349
        %1351 = vmatprep.subr.mxu0 0.0
        %v1352 = vand.u32 %v1282, 4294901760
        %1353 = vmatpush1.msra.mxu0 %v1352
        %1354 = vmatprep.subr.mxu0 0.0
        %v1355 = vand.u32 %v1283, 4294901760
        %1356 = vmatpush1.msra.mxu0 %v1355
        %1357 = vmatprep.subr.mxu0 0.0
        %v1358 = vand.u32 %v1284, 4294901760
        %1359 = vmatpush1.msra.mxu0 %v1358
        %1360 = vmatprep.subr.mxu0 0.0
        %v1361 = vand.u32 %v1285, 4294901760
        %1362 = vmatpush1.msra.mxu0 %v1361
        %1363 = vmatprep.subr.mxu0 0.0
        %v1364 = vand.u32 %v1286, 4294901760
        %1365 = vmatpush1.msra.mxu0 %v1364
        %1366 = vmatprep.subr.mxu0 0.0
        %v1367 = vand.u32 %v1287, 4294901760
        %1368 = vmatpush1.msra.mxu0 %v1367
        %1369 = vmatprep.subr.mxu0 0.0
        %v1370 = vand.u32 %v1288, 4294901760
        %1371 = vmatpush1.msra.mxu0 %v1370
        %1372 = vmatprep.subr.mxu0 0.0
        %v1373 = vand.u32 %v1289, 4294901760
        %1374 = vmatpush1.msra.mxu0 %v1373
        %1375 = vmatprep.subr.mxu0 0.0
        %v1376 = vand.u32 %v1290, 4294901760
        %1377 = vmatpush1.msra.mxu0 %v1376
        %1378 = vmatprep.subr.mxu0 0.0
        %v1379 = vand.u32 %v1291, 4294901760
        %1380 = vmatpush1.msra.mxu0 %v1379
        %1381 = vmatprep.subr.mxu0 0.0
        %v1382 = vand.u32 %v1292, 4294901760
        %1383 = vmatpush1.msra.mxu0 %v1382
        %1384 = vmatprep.subr.mxu0 0.0
        %v1385 = vand.u32 %v1293, 4294901760
        %1386 = vmatpush1.msra.mxu0 %v1385
        %1387 = vmatprep.subr.mxu0 0.0
        %v1388 = vand.u32 %v1294, 4294901760
        %1389 = vmatpush1.msra.mxu0 %v1388
        %1390 = vmatprep.subr.mxu0 0.0
        %v1391 = vand.u32 %v1295, 4294901760
        %1392 = vmatpush1.msra.mxu0 %v1391
        %1393 = vmatprep.subr.mxu0 0.0
        %v1394 = vand.u32 %v1296, 4294901760
        %1395 = vmatpush1.msra.mxu0 %v1394
        %1396 = vmatprep.subr.mxu0 0.0
        %v1397 = vand.u32 %v1297, 4294901760
        %1398 = vmatpush1.msra.mxu0 %v1397
        %1399 = vmatprep.subr.mxu0 0.0
        %v1400 = vand.u32 %v1298, 4294901760
        %1401 = vmatpush1.msra.mxu0 %v1400
        %v1402 = vand.u32 %v1264, 4294901760
        %v1403 = vsub.f32 %v1264, %v1402
        %v1404 = vand.u32 %v1403, 4294901760
        %v1405 = vsub.f32 %v1403, %v1404
        %v1406 = vand.u32 %v1405, 4294901760
        %1407 = vmatprep.mubr.f32.mxu0 %v1406
        %v1408 = vand.u32 %v1263, 4294901760
        %v1409 = vsub.f32 %v1263, %v1408
        %v1410 = vand.u32 %v1409, 4294901760
        %v1411 = vsub.f32 %v1409, %v1410
        %v1412 = vand.u32 %v1411, 4294901760
        %1413 = vmatmul.mubr.f32.gmra.mrb[0].mxu0 %v1412
        %v1414 = vpop.f32.mrb[0].mxu0
        %v1415 = vadd.f32 %v1304, %v1414
        %v1416 = vpop.f32.mrb[0].mxu0
        %v1417 = vand.u32 %v1266, 4294901760
        %v1418 = vsub.f32 %v1266, %v1417
        %v1419 = vand.u32 %v1418, 4294901760
        %v1420 = vsub.f32 %v1418, %v1419
        %v1421 = vand.u32 %v1420, 4294901760
        %1422 = vmatprep.mubr.f32.mxu0 %v1421
        %v1423 = vand.u32 %v1265, 4294901760
        %v1424 = vsub.f32 %v1265, %v1423
        %v1425 = vand.u32 %v1424, 4294901760
        %v1426 = vsub.f32 %v1424, %v1425
        %v1427 = vand.u32 %v1426, 4294901760
        %1428 = vmatmul.mubr.f32.gmra.mrb[0].mxu0 %v1427
        %v1429 = vpop.f32.mrb[0].mxu0
        %v1430 = vadd.f32 %v1304, %v1429
        %v1431 = vpop.f32.mrb[0].mxu0
        %1432 = vdwg.mxu0
        %1433 = vmatprep.subr.mxu0 0.0
        %v1434 = vand.u32 %v1267, 4294901760
        %v1435 = vsub.f32 %v1267, %v1434
        %v1436 = vand.u32 %v1435, 4294901760
        %v1437 = vsub.f32 %v1435, %v1436
        %v1438 = vand.u32 %v1437, 4294901760
        %1439 = vmatpush1.msra.mxu0 %v1438
        %1440 = vmatprep.subr.mxu0 0.0
        %v1441 = vand.u32 %v1268, 4294901760
        %v1442 = vsub.f32 %v1268, %v1441
        %v1443 = vand.u32 %v1442, 4294901760
        %v1444 = vsub.f32 %v1442, %v1443
        %v1445 = vand.u32 %v1444, 4294901760
        %1446 = vmatpush1.msra.mxu0 %v1445
        %1447 = vmatprep.subr.mxu0 0.0
        %v1448 = vand.u32 %v1269, 4294901760
        %v1449 = vsub.f32 %v1269, %v1448
        %v1450 = vand.u32 %v1449, 4294901760
        %v1451 = vsub.f32 %v1449, %v1450
        %v1452 = vand.u32 %v1451, 4294901760
        %1453 = vmatpush1.msra.mxu0 %v1452
        %1454 = vmatprep.subr.mxu0 0.0
        %v1455 = vand.u32 %v1270, 4294901760
        %v1456 = vsub.f32 %v1270, %v1455
        %v1457 = vand.u32 %v1456, 4294901760
        %v1458 = vsub.f32 %v1456, %v1457
        %v1459 = vand.u32 %v1458, 4294901760
        %1460 = vmatpush1.msra.mxu0 %v1459
        %1461 = vmatprep.subr.mxu0 0.0
        %v1462 = vand.u32 %v1271, 4294901760
        %v1463 = vsub.f32 %v1271, %v1462
        %v1464 = vand.u32 %v1463, 4294901760
        %v1465 = vsub.f32 %v1463, %v1464
        %v1466 = vand.u32 %v1465, 4294901760
        %1467 = vmatpush1.msra.mxu0 %v1466
        %1468 = vmatprep.subr.mxu0 0.0
        %v1469 = vand.u32 %v1272, 4294901760
        %v1470 = vsub.f32 %v1272, %v1469
        %v1471 = vand.u32 %v1470, 4294901760
        %v1472 = vsub.f32 %v1470, %v1471
        %v1473 = vand.u32 %v1472, 4294901760
        %1474 = vmatpush1.msra.mxu0 %v1473
        %1475 = vmatprep.subr.mxu0 0.0
        %v1476 = vand.u32 %v1273, 4294901760
        %v1477 = vsub.f32 %v1273, %v1476
        %v1478 = vand.u32 %v1477, 4294901760
        %v1479 = vsub.f32 %v1477, %v1478
        %v1480 = vand.u32 %v1479, 4294901760
        %1481 = vmatpush1.msra.mxu0 %v1480
        %1482 = vmatprep.subr.mxu0 0.0
        %v1483 = vand.u32 %v1274, 4294901760
        %v1484 = vsub.f32 %v1274, %v1483
        %v1485 = vand.u32 %v1484, 4294901760
        %v1486 = vsub.f32 %v1484, %v1485
        %v1487 = vand.u32 %v1486, 4294901760
        %1488 = vmatpush1.msra.mxu0 %v1487
        %1489 = vmatprep.subr.mxu0 0.0
        %v1490 = vand.u32 %v1275, 4294901760
        %v1491 = vsub.f32 %v1275, %v1490
        %v1492 = vand.u32 %v1491, 4294901760
        %v1493 = vsub.f32 %v1491, %v1492
        %v1494 = vand.u32 %v1493, 4294901760
        %1495 = vmatpush1.msra.mxu0 %v1494
        %1496 = vmatprep.subr.mxu0 0.0
        %v1497 = vand.u32 %v1276, 4294901760
        %v1498 = vsub.f32 %v1276, %v1497
        %v1499 = vand.u32 %v1498, 4294901760
        %v1500 = vsub.f32 %v1498, %v1499
        %v1501 = vand.u32 %v1500, 4294901760
        %1502 = vmatpush1.msra.mxu0 %v1501
        %1503 = vmatprep.subr.mxu0 0.0
        %v1504 = vand.u32 %v1277, 4294901760
        %v1505 = vsub.f32 %v1277, %v1504
        %v1506 = vand.u32 %v1505, 4294901760
        %v1507 = vsub.f32 %v1505, %v1506
        %v1508 = vand.u32 %v1507, 4294901760
        %1509 = vmatpush1.msra.mxu0 %v1508
        %1510 = vmatprep.subr.mxu0 0.0
        %v1511 = vand.u32 %v1278, 4294901760
        %v1512 = vsub.f32 %v1278, %v1511
        %v1513 = vand.u32 %v1512, 4294901760
        %v1514 = vsub.f32 %v1512, %v1513
        %v1515 = vand.u32 %v1514, 4294901760
        %1516 = vmatpush1.msra.mxu0 %v1515
        %1517 = vmatprep.subr.mxu0 0.0
        %v1518 = vand.u32 %v1279, 4294901760
        %v1519 = vsub.f32 %v1279, %v1518
        %v1520 = vand.u32 %v1519, 4294901760
        %v1521 = vsub.f32 %v1519, %v1520
        %v1522 = vand.u32 %v1521, 4294901760
        %1523 = vmatpush1.msra.mxu0 %v1522
        %1524 = vmatprep.subr.mxu0 0.0
        %v1525 = vand.u32 %v1280, 4294901760
        %v1526 = vsub.f32 %v1280, %v1525
        %v1527 = vand.u32 %v1526, 4294901760
        %v1528 = vsub.f32 %v1526, %v1527
        %v1529 = vand.u32 %v1528, 4294901760
        %1530 = vmatpush1.msra.mxu0 %v1529
        %1531 = vmatprep.subr.mxu0 0.0
        %v1532 = vand.u32 %v1281, 4294901760
        %v1533 = vsub.f32 %v1281, %v1532
        %v1534 = vand.u32 %v1533, 4294901760
        %v1535 = vsub.f32 %v1533, %v1534
        %v1536 = vand.u32 %v1535, 4294901760
        %1537 = vmatpush1.msra.mxu0 %v1536
        %1538 = vmatprep.subr.mxu0 0.0
        %v1539 = vand.u32 %v1282, 4294901760
        %v1540 = vsub.f32 %v1282, %v1539
        %v1541 = vand.u32 %v1540, 4294901760
        %v1542 = vsub.f32 %v1540, %v1541
        %v1543 = vand.u32 %v1542, 4294901760
        %1544 = vmatpush1.msra.mxu0 %v1543
        %1545 = vmatprep.subr.mxu0 0.0
        %v1546 = vand.u32 %v1283, 4294901760
        %v1547 = vsub.f32 %v1283, %v1546
        %v1548 = vand.u32 %v1547, 4294901760
        %v1549 = vsub.f32 %v1547, %v1548
        %v1550 = vand.u32 %v1549, 4294901760
        %1551 = vmatpush1.msra.mxu0 %v1550
        %1552 = vmatprep.subr.mxu0 0.0
        %v1553 = vand.u32 %v1284, 4294901760
        %v1554 = vsub.f32 %v1284, %v1553
        %v1555 = vand.u32 %v1554, 4294901760
        %v1556 = vsub.f32 %v1554, %v1555
        %v1557 = vand.u32 %v1556, 4294901760
        %1558 = vmatpush1.msra.mxu0 %v1557
        %1559 = vmatprep.subr.mxu0 0.0
        %v1560 = vand.u32 %v1285, 4294901760
        %v1561 = vsub.f32 %v1285, %v1560
        %v1562 = vand.u32 %v1561, 4294901760
        %v1563 = vsub.f32 %v1561, %v1562
        %v1564 = vand.u32 %v1563, 4294901760
        %1565 = vmatpush1.msra.mxu0 %v1564
        %1566 = vmatprep.subr.mxu0 0.0
        %v1567 = vand.u32 %v1286, 4294901760
        %v1568 = vsub.f32 %v1286, %v1567
        %v1569 = vand.u32 %v1568, 4294901760
        %v1570 = vsub.f32 %v1568, %v1569
        %v1571 = vand.u32 %v1570, 4294901760
        %1572 = vmatpush1.msra.mxu0 %v1571
        %1573 = vmatprep.subr.mxu0 0.0
        %v1574 = vand.u32 %v1287, 4294901760
        %v1575 = vsub.f32 %v1287, %v1574
        %v1576 = vand.u32 %v1575, 4294901760
        %v1577 = vsub.f32 %v1575, %v1576
        %v1578 = vand.u32 %v1577, 4294901760
        %1579 = vmatpush1.msra.mxu0 %v1578
        %1580 = vmatprep.subr.mxu0 0.0
        %v1581 = vand.u32 %v1288, 4294901760
        %v1582 = vsub.f32 %v1288, %v1581
        %v1583 = vand.u32 %v1582, 4294901760
        %v1584 = vsub.f32 %v1582, %v1583
        %v1585 = vand.u32 %v1584, 4294901760
        %1586 = vmatpush1.msra.mxu0 %v1585
        %1587 = vmatprep.subr.mxu0 0.0
        %v1588 = vand.u32 %v1289, 4294901760
        %v1589 = vsub.f32 %v1289, %v1588
        %v1590 = vand.u32 %v1589, 4294901760
        %v1591 = vsub.f32 %v1589, %v1590
        %v1592 = vand.u32 %v1591, 4294901760
        %1593 = vmatpush1.msra.mxu0 %v1592
        %1594 = vmatprep.subr.mxu0 0.0
        %v1595 = vand.u32 %v1290, 4294901760
        %v1596 = vsub.f32 %v1290, %v1595
        %v1597 = vand.u32 %v1596, 4294901760
        %v1598 = vsub.f32 %v1596, %v1597
        %v1599 = vand.u32 %v1598, 4294901760
        %1600 = vmatpush1.msra.mxu0 %v1599
        %1601 = vmatprep.subr.mxu0 0.0
        %v1602 = vand.u32 %v1291, 4294901760
        %v1603 = vsub.f32 %v1291, %v1602
        %v1604 = vand.u32 %v1603, 4294901760
        %v1605 = vsub.f32 %v1603, %v1604
        %v1606 = vand.u32 %v1605, 4294901760
        %1607 = vmatpush1.msra.mxu0 %v1606
        %1608 = vmatprep.subr.mxu0 0.0
        %v1609 = vand.u32 %v1292, 4294901760
        %v1610 = vsub.f32 %v1292, %v1609
        %v1611 = vand.u32 %v1610, 4294901760
        %v1612 = vsub.f32 %v1610, %v1611
        %v1613 = vand.u32 %v1612, 4294901760
        %1614 = vmatpush1.msra.mxu0 %v1613
        %1615 = vmatprep.subr.mxu0 0.0
        %v1616 = vand.u32 %v1293, 4294901760
        %v1617 = vsub.f32 %v1293, %v1616
        %v1618 = vand.u32 %v1617, 4294901760
        %v1619 = vsub.f32 %v1617, %v1618
        %v1620 = vand.u32 %v1619, 4294901760
        %1621 = vmatpush1.msra.mxu0 %v1620
        %1622 = vmatprep.subr.mxu0 0.0
        %v1623 = vand.u32 %v1294, 4294901760
        %v1624 = vsub.f32 %v1294, %v1623
        %v1625 = vand.u32 %v1624, 4294901760
        %v1626 = vsub.f32 %v1624, %v1625
        %v1627 = vand.u32 %v1626, 4294901760
        %1628 = vmatpush1.msra.mxu0 %v1627
        %1629 = vmatprep.subr.mxu0 0.0
        %v1630 = vand.u32 %v1295, 4294901760
        %v1631 = vsub.f32 %v1295, %v1630
        %v1632 = vand.u32 %v1631, 4294901760
        %v1633 = vsub.f32 %v1631, %v1632
        %v1634 = vand.u32 %v1633, 4294901760
        %1635 = vmatpush1.msra.mxu0 %v1634
        %1636 = vmatprep.subr.mxu0 0.0
        %v1637 = vand.u32 %v1296, 4294901760
        %v1638 = vsub.f32 %v1296, %v1637
        %v1639 = vand.u32 %v1638, 4294901760
        %v1640 = vsub.f32 %v1638, %v1639
        %v1641 = vand.u32 %v1640, 4294901760
        %1642 = vmatpush1.msra.mxu0 %v1641
        %1643 = vmatprep.subr.mxu0 0.0
        %v1644 = vand.u32 %v1297, 4294901760
        %v1645 = vsub.f32 %v1297, %v1644
        %v1646 = vand.u32 %v1645, 4294901760
        %v1647 = vsub.f32 %v1645, %v1646
        %v1648 = vand.u32 %v1647, 4294901760
        %1649 = vmatpush1.msra.mxu0 %v1648
        %1650 = vmatprep.subr.mxu0 0.0
        %v1651 = vand.u32 %v1298, 4294901760
        %v1652 = vsub.f32 %v1298, %v1651
        %v1653 = vand.u32 %v1652, 4294901760
        %v1654 = vsub.f32 %v1652, %v1653
        %v1655 = vand.u32 %v1654, 4294901760
        %1656 = vmatpush1.msra.mxu0 %v1655
        %v1657 = vand.u32 %v1264, 4294901760
        %1658 = vmatprep.mubr.f32.mxu0 %v1657
        %v1659 = vand.u32 %v1263, 4294901760
        %1660 = vmatmul.mubr.f32.gmra.mrb[0].mxu0 %v1659
        %v1661 = vpop.f32.mrb[0].mxu0
        %v1662 = vadd.f32 %v1415, %v1661
        %v1663 = vpop.f32.mrb[0].mxu0
        %v1664 = vand.u32 %v1266, 4294901760
        %1665 = vmatprep.mubr.f32.mxu0 %v1664
        %v1666 = vand.u32 %v1265, 4294901760
        %1667 = vmatmul.mubr.f32.gmra.mrb[0].mxu0 %v1666
        %v1668 = vpop.f32.mrb[0].mxu0
        %v1669 = vadd.f32 %v1430, %v1668
        %v1670 = vpop.f32.mrb[0].mxu0
        %1671 = vdwg.mxu0
        %1672 = vmatprep.subr.mxu0 0.0
        %v1673 = vand.u32 %v1267, 4294901760
        %v1674 = vsub.f32 %v1267, %v1673
        %1675 = vmatpush1.msra.mxu0 %v1674
        %1676 = vmatprep.subr.mxu0 0.0
        %v1677 = vand.u32 %v1268, 4294901760
        %v1678 = vsub.f32 %v1268, %v1677
        %1679 = vmatpush1.msra.mxu0 %v1678
        %1680 = vmatprep.subr.mxu0 0.0
        %v1681 = vand.u32 %v1269, 4294901760
        %v1682 = vsub.f32 %v1269, %v1681
        %1683 = vmatpush1.msra.mxu0 %v1682
        %1684 = vmatprep.subr.mxu0 0.0
        %v1685 = vand.u32 %v1270, 4294901760
        %v1686 = vsub.f32 %v1270, %v1685
        %1687 = vmatpush1.msra.mxu0 %v1686
        %1688 = vmatprep.subr.mxu0 0.0
        %v1689 = vand.u32 %v1271, 4294901760
        %v1690 = vsub.f32 %v1271, %v1689
        %1691 = vmatpush1.msra.mxu0 %v1690
        %1692 = vmatprep.subr.mxu0 0.0
        %v1693 = vand.u32 %v1272, 4294901760
        %v1694 = vsub.f32 %v1272, %v1693
        %1695 = vmatpush1.msra.mxu0 %v1694
        %1696 = vmatprep.subr.mxu0 0.0
        %v1697 = vand.u32 %v1273, 4294901760
        %v1698 = vsub.f32 %v1273, %v1697
        %1699 = vmatpush1.msra.mxu0 %v1698
        %1700 = vmatprep.subr.mxu0 0.0
        %v1701 = vand.u32 %v1274, 4294901760
        %v1702 = vsub.f32 %v1274, %v1701
        %1703 = vmatpush1.msra.mxu0 %v1702
        %1704 = vmatprep.subr.mxu0 0.0
        %v1705 = vand.u32 %v1275, 4294901760
        %v1706 = vsub.f32 %v1275, %v1705
        %1707 = vmatpush1.msra.mxu0 %v1706
        %1708 = vmatprep.subr.mxu0 0.0
        %v1709 = vand.u32 %v1276, 4294901760
        %v1710 = vsub.f32 %v1276, %v1709
        %1711 = vmatpush1.msra.mxu0 %v1710
        %1712 = vmatprep.subr.mxu0 0.0
        %v1713 = vand.u32 %v1277, 4294901760
        %v1714 = vsub.f32 %v1277, %v1713
        %1715 = vmatpush1.msra.mxu0 %v1714
        %1716 = vmatprep.subr.mxu0 0.0
        %v1717 = vand.u32 %v1278, 4294901760
        %v1718 = vsub.f32 %v1278, %v1717
        %1719 = vmatpush1.msra.mxu0 %v1718
        %1720 = vmatprep.subr.mxu0 0.0
        %v1721 = vand.u32 %v1279, 4294901760
        %v1722 = vsub.f32 %v1279, %v1721
        %1723 = vmatpush1.msra.mxu0 %v1722
        %1724 = vmatprep.subr.mxu0 0.0
        %v1725 = vand.u32 %v1280, 4294901760
        %v1726 = vsub.f32 %v1280, %v1725
        %1727 = vmatpush1.msra.mxu0 %v1726
        %1728 = vmatprep.subr.mxu0 0.0
        %v1729 = vand.u32 %v1281, 4294901760
        %v1730 = vsub.f32 %v1281, %v1729
        %1731 = vmatpush1.msra.mxu0 %v1730
        %1732 = vmatprep.subr.mxu0 0.0
        %v1733 = vand.u32 %v1282, 4294901760
        %v1734 = vsub.f32 %v1282, %v1733
        %1735 = vmatpush1.msra.mxu0 %v1734
        %1736 = vmatprep.subr.mxu0 0.0
        %v1737 = vand.u32 %v1283, 4294901760
        %v1738 = vsub.f32 %v1283, %v1737
        %1739 = vmatpush1.msra.mxu0 %v1738
        %1740 = vmatprep.subr.mxu0 0.0
        %v1741 = vand.u32 %v1284, 4294901760
        %v1742 = vsub.f32 %v1284, %v1741
        %1743 = vmatpush1.msra.mxu0 %v1742
        %1744 = vmatprep.subr.mxu0 0.0
        %v1745 = vand.u32 %v1285, 4294901760
        %v1746 = vsub.f32 %v1285, %v1745
        %1747 = vmatpush1.msra.mxu0 %v1746
        %1748 = vmatprep.subr.mxu0 0.0
        %v1749 = vand.u32 %v1286, 4294901760
        %v1750 = vsub.f32 %v1286, %v1749
        %1751 = vmatpush1.msra.mxu0 %v1750
        %1752 = vmatprep.subr.mxu0 0.0
        %v1753 = vand.u32 %v1287, 4294901760
        %v1754 = vsub.f32 %v1287, %v1753
        %1755 = vmatpush1.msra.mxu0 %v1754
        %1756 = vmatprep.subr.mxu0 0.0
        %v1757 = vand.u32 %v1288, 4294901760
        %v1758 = vsub.f32 %v1288, %v1757
        %1759 = vmatpush1.msra.mxu0 %v1758
        %1760 = vmatprep.subr.mxu0 0.0
        %v1761 = vand.u32 %v1289, 4294901760
        %v1762 = vsub.f32 %v1289, %v1761
        %1763 = vmatpush1.msra.mxu0 %v1762
        %1764 = vmatprep.subr.mxu0 0.0
        %v1765 = vand.u32 %v1290, 4294901760
        %v1766 = vsub.f32 %v1290, %v1765
        %1767 = vmatpush1.msra.mxu0 %v1766
        %1768 = vmatprep.subr.mxu0 0.0
        %v1769 = vand.u32 %v1291, 4294901760
        %v1770 = vsub.f32 %v1291, %v1769
        %1771 = vmatpush1.msra.mxu0 %v1770
        %1772 = vmatprep.subr.mxu0 0.0
        %v1773 = vand.u32 %v1292, 4294901760
        %v1774 = vsub.f32 %v1292, %v1773
        %1775 = vmatpush1.msra.mxu0 %v1774
        %1776 = vmatprep.subr.mxu0 0.0
        %v1777 = vand.u32 %v1293, 4294901760
        %v1778 = vsub.f32 %v1293, %v1777
        %1779 = vmatpush1.msra.mxu0 %v1778
        %1780 = vmatprep.subr.mxu0 0.0
        %v1781 = vand.u32 %v1294, 4294901760
        %v1782 = vsub.f32 %v1294, %v1781
        %1783 = vmatpush1.msra.mxu0 %v1782
        %1784 = vmatprep.subr.mxu0 0.0
        %v1785 = vand.u32 %v1295, 4294901760
        %v1786 = vsub.f32 %v1295, %v1785
        %1787 = vmatpush1.msra.mxu0 %v1786
        %1788 = vmatprep.subr.mxu0 0.0
        %v1789 = vand.u32 %v1296, 4294901760
        %v1790 = vsub.f32 %v1296, %v1789
        %1791 = vmatpush1.msra.mxu0 %v1790
        %1792 = vmatprep.subr.mxu0 0.0
        %v1793 = vand.u32 %v1297, 4294901760
        %v1794 = vsub.f32 %v1297, %v1793
        %1795 = vmatpush1.msra.mxu0 %v1794
        %1796 = vmatprep.subr.mxu0 0.0
        %v1797 = vand.u32 %v1298, 4294901760
        %v1798 = vsub.f32 %v1298, %v1797
        %1799 = vmatpush1.msra.mxu0 %v1798
        %v1800 = vand.u32 %v1264, 4294901760
        %v1801 = vsub.f32 %v1264, %v1800
        %1802 = vmatprep.mubr.f32.mxu0 %v1801
        %v1803 = vand.u32 %v1263, 4294901760
        %v1804 = vsub.f32 %v1263, %v1803
        %1805 = vmatmul.mubr.f32.gmra.mrb[0].mxu0 %v1804
        %v1806 = vpop.f32.mrb[0].mxu0
        %v1807 = vadd.f32 %v1662, %v1806
        %v1808 = vpop.f32.mrb[0].mxu0
        %v1809 = vand.u32 %v1266, 4294901760
        %v1810 = vsub.f32 %v1266, %v1809
        %1811 = vmatprep.mubr.f32.mxu0 %v1810
        %v1812 = vand.u32 %v1265, 4294901760
        %v1813 = vsub.f32 %v1265, %v1812
        %1814 = vmatmul.mubr.f32.gmra.mrb[0].mxu0 %v1813
        %v1815 = vpop.f32.mrb[0].mxu0
        %v1816 = vadd.f32 %v1669, %v1815
        %v1817 = vpop.f32.mrb[0].mxu0
        %1818 = vdwg.mxu0
        %1819 = vmatprep.subr.mxu0 0.0
        %v1820 = vand.u32 %v1267, 4294901760
        %1821 = vmatpush1.msra.mxu0 %v1820
        %1822 = vmatprep.subr.mxu0 0.0
        %v1823 = vand.u32 %v1268, 4294901760
        %1824 = vmatpush1.msra.mxu0 %v1823
        %1825 = vmatprep.subr.mxu0 0.0
        %v1826 = vand.u32 %v1269, 4294901760
        %1827 = vmatpush1.msra.mxu0 %v1826
        %1828 = vmatprep.subr.mxu0 0.0
        %v1829 = vand.u32 %v1270, 4294901760
        %1830 = vmatpush1.msra.mxu0 %v1829
        %1831 = vmatprep.subr.mxu0 0.0
        %v1832 = vand.u32 %v1271, 4294901760
        %1833 = vmatpush1.msra.mxu0 %v1832
        %1834 = vmatprep.subr.mxu0 0.0
        %v1835 = vand.u32 %v1272, 4294901760
        %1836 = vmatpush1.msra.mxu0 %v1835
        %1837 = vmatprep.subr.mxu0 0.0
        %v1838 = vand.u32 %v1273, 4294901760
        %1839 = vmatpush1.msra.mxu0 %v1838
        %1840 = vmatprep.subr.mxu0 0.0
        %v1841 = vand.u32 %v1274, 4294901760
        %1842 = vmatpush1.msra.mxu0 %v1841
        %1843 = vmatprep.subr.mxu0 0.0
        %v1844 = vand.u32 %v1275, 4294901760
        %1845 = vmatpush1.msra.mxu0 %v1844
        %1846 = vmatprep.subr.mxu0 0.0
        %v1847 = vand.u32 %v1276, 4294901760
        %1848 = vmatpush1.msra.mxu0 %v1847
        %1849 = vmatprep.subr.mxu0 0.0
        %v1850 = vand.u32 %v1277, 4294901760
        %1851 = vmatpush1.msra.mxu0 %v1850
        %1852 = vmatprep.subr.mxu0 0.0
        %v1853 = vand.u32 %v1278, 4294901760
        %1854 = vmatpush1.msra.mxu0 %v1853
        %1855 = vmatprep.subr.mxu0 0.0
        %v1856 = vand.u32 %v1279, 4294901760
        %1857 = vmatpush1.msra.mxu0 %v1856
        %1858 = vmatprep.subr.mxu0 0.0
        %v1859 = vand.u32 %v1280, 4294901760
        %1860 = vmatpush1.msra.mxu0 %v1859
        %1861 = vmatprep.subr.mxu0 0.0
        %v1862 = vand.u32 %v1281, 4294901760
        %1863 = vmatpush1.msra.mxu0 %v1862
        %1864 = vmatprep.subr.mxu0 0.0
        %v1865 = vand.u32 %v1282, 4294901760
        %1866 = vmatpush1.msra.mxu0 %v1865
        %1867 = vmatprep.subr.mxu0 0.0
        %v1868 = vand.u32 %v1283, 4294901760
        %1869 = vmatpush1.msra.mxu0 %v1868
        %1870 = vmatprep.subr.mxu0 0.0
        %v1871 = vand.u32 %v1284, 4294901760
        %1872 = vmatpush1.msra.mxu0 %v1871
        %1873 = vmatprep.subr.mxu0 0.0
        %v1874 = vand.u32 %v1285, 4294901760
        %1875 = vmatpush1.msra.mxu0 %v1874
        %1876 = vmatprep.subr.mxu0 0.0
        %v1877 = vand.u32 %v1286, 4294901760
        %1878 = vmatpush1.msra.mxu0 %v1877
        %1879 = vmatprep.subr.mxu0 0.0
        %v1880 = vand.u32 %v1287, 4294901760
        %1881 = vmatpush1.msra.mxu0 %v1880
        %1882 = vmatprep.subr.mxu0 0.0
        %v1883 = vand.u32 %v1288, 4294901760
        %1884 = vmatpush1.msra.mxu0 %v1883
        %1885 = vmatprep.subr.mxu0 0.0
        %v1886 = vand.u32 %v1289, 4294901760
        %1887 = vmatpush1.msra.mxu0 %v1886
        %1888 = vmatprep.subr.mxu0 0.0
        %v1889 = vand.u32 %v1290, 4294901760
        %1890 = vmatpush1.msra.mxu0 %v1889
        %1891 = vmatprep.subr.mxu0 0.0
        %v1892 = vand.u32 %v1291, 4294901760
        %1893 = vmatpush1.msra.mxu0 %v1892
        %1894 = vmatprep.subr.mxu0 0.0
        %v1895 = vand.u32 %v1292, 4294901760
        %1896 = vmatpush1.msra.mxu0 %v1895
        %1897 = vmatprep.subr.mxu0 0.0
        %v1898 = vand.u32 %v1293, 4294901760
        %1899 = vmatpush1.msra.mxu0 %v1898
        %1900 = vmatprep.subr.mxu0 0.0
        %v1901 = vand.u32 %v1294, 4294901760
        %1902 = vmatpush1.msra.mxu0 %v1901
        %1903 = vmatprep.subr.mxu0 0.0
        %v1904 = vand.u32 %v1295, 4294901760
        %1905 = vmatpush1.msra.mxu0 %v1904
        %1906 = vmatprep.subr.mxu0 0.0
        %v1907 = vand.u32 %v1296, 4294901760
        %1908 = vmatpush1.msra.mxu0 %v1907
        %1909 = vmatprep.subr.mxu0 0.0
        %v1910 = vand.u32 %v1297, 4294901760
        %1911 = vmatpush1.msra.mxu0 %v1910
        %1912 = vmatprep.subr.mxu0 0.0
        %v1913 = vand.u32 %v1298, 4294901760
        %1914 = vmatpush1.msra.mxu0 %v1913
        %v1915 = vand.u32 %v1264, 4294901760
        %v1916 = vsub.f32 %v1264, %v1915
        %v1917 = vand.u32 %v1916, 4294901760
        %1918 = vmatprep.mubr.f32.mxu0 %v1917
        %v1919 = vand.u32 %v1263, 4294901760
        %v1920 = vsub.f32 %v1263, %v1919
        %v1921 = vand.u32 %v1920, 4294901760
        %1922 = vmatmul.mubr.f32.gmra.mrb[0].mxu0 %v1921
        %v1923 = vpop.f32.mrb[0].mxu0
        %v1924 = vadd.f32 %v1807, %v1923
        %v1925 = vpop.f32.mrb[0].mxu0
        %v1926 = vand.u32 %v1266, 4294901760
        %v1927 = vsub.f32 %v1266, %v1926
        %v1928 = vand.u32 %v1927, 4294901760
        %1929 = vmatprep.mubr.f32.mxu0 %v1928
        %v1930 = vand.u32 %v1265, 4294901760
        %v1931 = vsub.f32 %v1265, %v1930
        %v1932 = vand.u32 %v1931, 4294901760
        %1933 = vmatmul.mubr.f32.gmra.mrb[0].mxu0 %v1932
        %v1934 = vpop.f32.mrb[0].mxu0
        %v1935 = vadd.f32 %v1816, %v1934
        %v1936 = vpop.f32.mrb[0].mxu0
        %1937 = vdwg.mxu0
        %1938 = vmatprep.subr.mxu0 0.0
        %v1939 = vand.u32 %v1267, 4294901760
        %v1940 = vsub.f32 %v1267, %v1939
        %v1941 = vand.u32 %v1940, 4294901760
        %1942 = vmatpush1.msra.mxu0 %v1941
        %1943 = vmatprep.subr.mxu0 0.0
        %v1944 = vand.u32 %v1268, 4294901760
        %v1945 = vsub.f32 %v1268, %v1944
        %v1946 = vand.u32 %v1945, 4294901760
        %1947 = vmatpush1.msra.mxu0 %v1946
        %1948 = vmatprep.subr.mxu0 0.0
        %v1949 = vand.u32 %v1269, 4294901760
        %v1950 = vsub.f32 %v1269, %v1949
        %v1951 = vand.u32 %v1950, 4294901760
        %1952 = vmatpush1.msra.mxu0 %v1951
        %1953 = vmatprep.subr.mxu0 0.0
        %v1954 = vand.u32 %v1270, 4294901760
        %v1955 = vsub.f32 %v1270, %v1954
        %v1956 = vand.u32 %v1955, 4294901760
        %1957 = vmatpush1.msra.mxu0 %v1956
        %1958 = vmatprep.subr.mxu0 0.0
        %v1959 = vand.u32 %v1271, 4294901760
        %v1960 = vsub.f32 %v1271, %v1959
        %v1961 = vand.u32 %v1960, 4294901760
        %1962 = vmatpush1.msra.mxu0 %v1961
        %1963 = vmatprep.subr.mxu0 0.0
        %v1964 = vand.u32 %v1272, 4294901760
        %v1965 = vsub.f32 %v1272, %v1964
        %v1966 = vand.u32 %v1965, 4294901760
        %1967 = vmatpush1.msra.mxu0 %v1966
        %1968 = vmatprep.subr.mxu0 0.0
        %v1969 = vand.u32 %v1273, 4294901760
        %v1970 = vsub.f32 %v1273, %v1969
        %v1971 = vand.u32 %v1970, 4294901760
        %1972 = vmatpush1.msra.mxu0 %v1971
        %1973 = vmatprep.subr.mxu0 0.0
        %v1974 = vand.u32 %v1274, 4294901760
        %v1975 = vsub.f32 %v1274, %v1974
        %v1976 = vand.u32 %v1975, 4294901760
        %1977 = vmatpush1.msra.mxu0 %v1976
        %1978 = vmatprep.subr.mxu0 0.0
        %v1979 = vand.u32 %v1275, 4294901760
        %v1980 = vsub.f32 %v1275, %v1979
        %v1981 = vand.u32 %v1980, 4294901760
        %1982 = vmatpush1.msra.mxu0 %v1981
        %1983 = vmatprep.subr.mxu0 0.0
        %v1984 = vand.u32 %v1276, 4294901760
        %v1985 = vsub.f32 %v1276, %v1984
        %v1986 = vand.u32 %v1985, 4294901760
        %1987 = vmatpush1.msra.mxu0 %v1986
        %1988 = vmatprep.subr.mxu0 0.0
        %v1989 = vand.u32 %v1277, 4294901760
        %v1990 = vsub.f32 %v1277, %v1989
        %v1991 = vand.u32 %v1990, 4294901760
        %1992 = vmatpush1.msra.mxu0 %v1991
        %1993 = vmatprep.subr.mxu0 0.0
        %v1994 = vand.u32 %v1278, 4294901760
        %v1995 = vsub.f32 %v1278, %v1994
        %v1996 = vand.u32 %v1995, 4294901760
        %1997 = vmatpush1.msra.mxu0 %v1996
        %1998 = vmatprep.subr.mxu0 0.0
        %v1999 = vand.u32 %v1279, 4294901760
        %v2000 = vsub.f32 %v1279, %v1999
        %v2001 = vand.u32 %v2000, 4294901760
        %2002 = vmatpush1.msra.mxu0 %v2001
        %2003 = vmatprep.subr.mxu0 0.0
        %v2004 = vand.u32 %v1280, 4294901760
        %v2005 = vsub.f32 %v1280, %v2004
        %v2006 = vand.u32 %v2005, 4294901760
        %2007 = vmatpush1.msra.mxu0 %v2006
        %2008 = vmatprep.subr.mxu0 0.0
        %v2009 = vand.u32 %v1281, 4294901760
        %v2010 = vsub.f32 %v1281, %v2009
        %v2011 = vand.u32 %v2010, 4294901760
        %2012 = vmatpush1.msra.mxu0 %v2011
        %2013 = vmatprep.subr.mxu0 0.0
        %v2014 = vand.u32 %v1282, 4294901760
        %v2015 = vsub.f32 %v1282, %v2014
        %v2016 = vand.u32 %v2015, 4294901760
        %2017 = vmatpush1.msra.mxu0 %v2016
        %2018 = vmatprep.subr.mxu0 0.0
        %v2019 = vand.u32 %v1283, 4294901760
        %v2020 = vsub.f32 %v1283, %v2019
        %v2021 = vand.u32 %v2020, 4294901760
        %2022 = vmatpush1.msra.mxu0 %v2021
        %2023 = vmatprep.subr.mxu0 0.0
        %v2024 = vand.u32 %v1284, 4294901760
        %v2025 = vsub.f32 %v1284, %v2024
        %v2026 = vand.u32 %v2025, 4294901760
        %2027 = vmatpush1.msra.mxu0 %v2026
        %2028 = vmatprep.subr.mxu0 0.0
        %v2029 = vand.u32 %v1285, 4294901760
        %v2030 = vsub.f32 %v1285, %v2029
        %v2031 = vand.u32 %v2030, 4294901760
        %2032 = vmatpush1.msra.mxu0 %v2031
        %2033 = vmatprep.subr.mxu0 0.0
        %v2034 = vand.u32 %v1286, 4294901760
        %v2035 = vsub.f32 %v1286, %v2034
        %v2036 = vand.u32 %v2035, 4294901760
        %2037 = vmatpush1.msra.mxu0 %v2036
        %2038 = vmatprep.subr.mxu0 0.0
        %v2039 = vand.u32 %v1287, 4294901760
        %v2040 = vsub.f32 %v1287, %v2039
        %v2041 = vand.u32 %v2040, 4294901760
        %2042 = vmatpush1.msra.mxu0 %v2041
        %2043 = vmatprep.subr.mxu0 0.0
        %v2044 = vand.u32 %v1288, 4294901760
        %v2045 = vsub.f32 %v1288, %v2044
        %v2046 = vand.u32 %v2045, 4294901760
        %2047 = vmatpush1.msra.mxu0 %v2046
        %2048 = vmatprep.subr.mxu0 0.0
        %v2049 = vand.u32 %v1289, 4294901760
        %v2050 = vsub.f32 %v1289, %v2049
        %v2051 = vand.u32 %v2050, 4294901760
        %2052 = vmatpush1.msra.mxu0 %v2051
        %2053 = vmatprep.subr.mxu0 0.0
        %v2054 = vand.u32 %v1290, 4294901760
        %v2055 = vsub.f32 %v1290, %v2054
        %v2056 = vand.u32 %v2055, 4294901760
        %2057 = vmatpush1.msra.mxu0 %v2056
        %2058 = vmatprep.subr.mxu0 0.0
        %v2059 = vand.u32 %v1291, 4294901760
        %v2060 = vsub.f32 %v1291, %v2059
        %v2061 = vand.u32 %v2060, 4294901760
        %2062 = vmatpush1.msra.mxu0 %v2061
        %2063 = vmatprep.subr.mxu0 0.0
        %v2064 = vand.u32 %v1292, 4294901760
        %v2065 = vsub.f32 %v1292, %v2064
        %v2066 = vand.u32 %v2065, 4294901760
        %2067 = vmatpush1.msra.mxu0 %v2066
        %2068 = vmatprep.subr.mxu0 0.0
        %v2069 = vand.u32 %v1293, 4294901760
        %v2070 = vsub.f32 %v1293, %v2069
        %v2071 = vand.u32 %v2070, 4294901760
        %2072 = vmatpush1.msra.mxu0 %v2071
        %2073 = vmatprep.subr.mxu0 0.0
        %v2074 = vand.u32 %v1294, 4294901760
        %v2075 = vsub.f32 %v1294, %v2074
        %v2076 = vand.u32 %v2075, 4294901760
        %2077 = vmatpush1.msra.mxu0 %v2076
        %2078 = vmatprep.subr.mxu0 0.0
        %v2079 = vand.u32 %v1295, 4294901760
        %v2080 = vsub.f32 %v1295, %v2079
        %v2081 = vand.u32 %v2080, 4294901760
        %2082 = vmatpush1.msra.mxu0 %v2081
        %2083 = vmatprep.subr.mxu0 0.0
        %v2084 = vand.u32 %v1296, 4294901760
        %v2085 = vsub.f32 %v1296, %v2084
        %v2086 = vand.u32 %v2085, 4294901760
        %2087 = vmatpush1.msra.mxu0 %v2086
        %2088 = vmatprep.subr.mxu0 0.0
        %v2089 = vand.u32 %v1297, 4294901760
        %v2090 = vsub.f32 %v1297, %v2089
        %v2091 = vand.u32 %v2090, 4294901760
        %2092 = vmatpush1.msra.mxu0 %v2091
        %2093 = vmatprep.subr.mxu0 0.0
        %v2094 = vand.u32 %v1298, 4294901760
        %v2095 = vsub.f32 %v1298, %v2094
        %v2096 = vand.u32 %v2095, 4294901760
        %2097 = vmatpush1.msra.mxu0 %v2096
        %v2098 = vand.u32 %v1264, 4294901760
        %2099 = vmatprep.mubr.f32.mxu0 %v2098
        %v2100 = vand.u32 %v1263, 4294901760
        %2101 = vmatmul.mubr.f32.gmra.mrb[0].mxu0 %v2100
        %v2102 = vpop.f32.mrb[0].mxu0
        %v2103 = vadd.f32 %v1924, %v2102
        %v2104 = vpop.f32.mrb[0].mxu0
        %v2105 = vand.u32 %v1266, 4294901760
        %2106 = vmatprep.mubr.f32.mxu0 %v2105
        %v2107 = vand.u32 %v1265, 4294901760
        %2108 = vmatmul.mubr.f32.gmra.mrb[0].mxu0 %v2107
        %v2109 = vpop.f32.mrb[0].mxu0
        %v2110 = vadd.f32 %v1935, %v2109
        %v2111 = vpop.f32.mrb[0].mxu0
        %2112 = vdwg.mxu0
        %2113 = vmatprep.subr.mxu0 0.0
        %v2114 = vand.u32 %v1267, 4294901760
        %2115 = vmatpush1.msra.mxu0 %v2114
        %2116 = vmatprep.subr.mxu0 0.0
        %v2117 = vand.u32 %v1268, 4294901760
        %2118 = vmatpush1.msra.mxu0 %v2117
        %2119 = vmatprep.subr.mxu0 0.0
        %v2120 = vand.u32 %v1269, 4294901760
        %2121 = vmatpush1.msra.mxu0 %v2120
        %2122 = vmatprep.subr.mxu0 0.0
        %v2123 = vand.u32 %v1270, 4294901760
        %2124 = vmatpush1.msra.mxu0 %v2123
        %2125 = vmatprep.subr.mxu0 0.0
        %v2126 = vand.u32 %v1271, 4294901760
        %2127 = vmatpush1.msra.mxu0 %v2126
        %2128 = vmatprep.subr.mxu0 0.0
        %v2129 = vand.u32 %v1272, 4294901760
        %2130 = vmatpush1.msra.mxu0 %v2129
        %2131 = vmatprep.subr.mxu0 0.0
        %v2132 = vand.u32 %v1273, 4294901760
        %2133 = vmatpush1.msra.mxu0 %v2132
        %2134 = vmatprep.subr.mxu0 0.0
        %v2135 = vand.u32 %v1274, 4294901760
        %2136 = vmatpush1.msra.mxu0 %v2135
        %2137 = vmatprep.subr.mxu0 0.0
        %v2138 = vand.u32 %v1275, 4294901760
        %2139 = vmatpush1.msra.mxu0 %v2138
        %2140 = vmatprep.subr.mxu0 0.0
        %v2141 = vand.u32 %v1276, 4294901760
        %2142 = vmatpush1.msra.mxu0 %v2141
        %2143 = vmatprep.subr.mxu0 0.0
        %v2144 = vand.u32 %v1277, 4294901760
        %2145 = vmatpush1.msra.mxu0 %v2144
        %2146 = vmatprep.subr.mxu0 0.0
        %v2147 = vand.u32 %v1278, 4294901760
        %2148 = vmatpush1.msra.mxu0 %v2147
        %2149 = vmatprep.subr.mxu0 0.0
        %v2150 = vand.u32 %v1279, 4294901760
        %2151 = vmatpush1.msra.mxu0 %v2150
        %2152 = vmatprep.subr.mxu0 0.0
        %v2153 = vand.u32 %v1280, 4294901760
        %2154 = vmatpush1.msra.mxu0 %v2153
        %2155 = vmatprep.subr.mxu0 0.0
        %v2156 = vand.u32 %v1281, 4294901760
        %2157 = vmatpush1.msra.mxu0 %v2156
        %2158 = vmatprep.subr.mxu0 0.0
        %v2159 = vand.u32 %v1282, 4294901760
        %2160 = vmatpush1.msra.mxu0 %v2159
        %2161 = vmatprep.subr.mxu0 0.0
        %v2162 = vand.u32 %v1283, 4294901760
        %2163 = vmatpush1.msra.mxu0 %v2162
        %2164 = vmatprep.subr.mxu0 0.0
        %v2165 = vand.u32 %v1284, 4294901760
        %2166 = vmatpush1.msra.mxu0 %v2165
        %2167 = vmatprep.subr.mxu0 0.0
        %v2168 = vand.u32 %v1285, 4294901760
        %2169 = vmatpush1.msra.mxu0 %v2168
        %2170 = vmatprep.subr.mxu0 0.0
        %v2171 = vand.u32 %v1286, 4294901760
        %2172 = vmatpush1.msra.mxu0 %v2171
        %2173 = vmatprep.subr.mxu0 0.0
        %v2174 = vand.u32 %v1287, 4294901760
        %2175 = vmatpush1.msra.mxu0 %v2174
        %2176 = vmatprep.subr.mxu0 0.0
        %v2177 = vand.u32 %v1288, 4294901760
        %2178 = vmatpush1.msra.mxu0 %v2177
        %2179 = vmatprep.subr.mxu0 0.0
        %v2180 = vand.u32 %v1289, 4294901760
        %2181 = vmatpush1.msra.mxu0 %v2180
        %2182 = vmatprep.subr.mxu0 0.0
        %v2183 = vand.u32 %v1290, 4294901760
        %2184 = vmatpush1.msra.mxu0 %v2183
        %2185 = vmatprep.subr.mxu0 0.0
        %v2186 = vand.u32 %v1291, 4294901760
        %2187 = vmatpush1.msra.mxu0 %v2186
        %2188 = vmatprep.subr.mxu0 0.0
        %v2189 = vand.u32 %v1292, 4294901760
        %2190 = vmatpush1.msra.mxu0 %v2189
        %2191 = vmatprep.subr.mxu0 0.0
        %v2192 = vand.u32 %v1293, 4294901760
        %2193 = vmatpush1.msra.mxu0 %v2192
        %2194 = vmatprep.subr.mxu0 0.0
        %v2195 = vand.u32 %v1294, 4294901760
        %2196 = vmatpush1.msra.mxu0 %v2195
        %2197 = vmatprep.subr.mxu0 0.0
        %v2198 = vand.u32 %v1295, 4294901760
        %2199 = vmatpush1.msra.mxu0 %v2198
        %2200 = vmatprep.subr.mxu0 0.0
        %v2201 = vand.u32 %v1296, 4294901760
        %2202 = vmatpush1.msra.mxu0 %v2201
        %2203 = vmatprep.subr.mxu0 0.0
        %v2204 = vand.u32 %v1297, 4294901760
        %2205 = vmatpush1.msra.mxu0 %v2204
        %2206 = vmatprep.subr.mxu0 0.0
        %v2207 = vand.u32 %v1298, 4294901760
        %2208 = vmatpush1.msra.mxu0 %v2207
        %v2209 = vand.u32 %v1264, 4294901760
        %2210 = vmatprep.mubr.f32.mxu0 %v2209
        %v2211 = vand.u32 %v1263, 4294901760
        %2212 = vmatmul.mubr.f32.gmra.mrb[0].mxu0 %v2211
        %v2213 = vpop.f32.mrb[0].mxu0
        %v2214 = vadd.f32 %v2103, %v2213
        %v2215 = vpop.f32.mrb[0].mxu0
        %v2216 = vand.u32 %v1266, 4294901760
        %2217 = vmatprep.mubr.f32.mxu0 %v2216
        %v2218 = vand.u32 %v1265, 4294901760
        %2219 = vmatmul.mubr.f32.gmra.mrb[0].mxu0 %v2218
        %v2220 = vpop.f32.mrb[0].mxu0
        %v2221 = vadd.f32 %v2110, %v2220
        %v2222 = vpop.f32.mrb[0].mxu0
        %2223 = vdwg.mxu0
        %v2224 = vmax.f32 %v2214, 0.0
        %v2225 = vmax.f32 %v2221, 0.0
        %v2226 = vld [vmem:[%s5] sm:$0xff]
        %v2227 = vld [vmem:[%s5 + $0x8] sm:$0xff]
        %v2228 = vld [vmem:[%s5 + $0x10] sm:$0xff]
        %v2229 = vld [vmem:[%s5 + $0x18] sm:$0xff]
        %v2230 = vld [vmem:[%s5 + $0x20] sm:$0xff]
        %v2231 = vld [vmem:[%s5 + $0x28] sm:$0xff]
        %v2232 = vld [vmem:[%s5 + $0x30] sm:$0xff]
        %v2233 = vld [vmem:[%s5 + $0x38] sm:$0xff]
        %v2234 = vld [vmem:[%s5 + $0x40] sm:$0xff]
        %v2235 = vld [vmem:[%s5 + $0x48] sm:$0xff]
        %v2236 = vld [vmem:[%s5 + $0x50] sm:$0xff]
        %v2237 = vld [vmem:[%s5 + $0x58] sm:$0xff]
        %v2238 = vld [vmem:[%s5 + $0x60] sm:$0xff]
        %v2239 = vld [vmem:[%s5 + $0x68] sm:$0xff]
        %v2240 = vld [vmem:[%s5 + $0x70] sm:$0xff]
        %v2241 = vld [vmem:[%s5 + $0x78] sm:$0xff]
        %s2242 = sld [smem:[#allocation2]]
        %v2243 = vstv %s2242
        %2244 = vmatprep.subr.mxu0 0.0
        %v2245 = vand.u32 %v2226, 4294901760
        %2246 = vmatpush1.msra.mxu0 %v2245
        %2247 = vmatprep.subr.mxu0 0.0
        %v2248 = vand.u32 %v2227, 4294901760
        %2249 = vmatpush1.msra.mxu0 %v2248
        %2250 = vmatprep.subr.mxu0 0.0
        %v2251 = vand.u32 %v2228, 4294901760
        %2252 = vmatpush1.msra.mxu0 %v2251
        %2253 = vmatprep.subr.mxu0 0.0
        %v2254 = vand.u32 %v2229, 4294901760
        %2255 = vmatpush1.msra.mxu0 %v2254
        %2256 = vmatprep.subr.mxu0 0.0
        %v2257 = vand.u32 %v2230, 4294901760
        %2258 = vmatpush1.msra.mxu0 %v2257
        %2259 = vmatprep.subr.mxu0 0.0
        %v2260 = vand.u32 %v2231, 4294901760
        %2261 = vmatpush1.msra.mxu0 %v2260
        %2262 = vmatprep.subr.mxu0 0.0
        %v2263 = vand.u32 %v2232, 4294901760
        %2264 = vmatpush1.msra.mxu0 %v2263
        %2265 = vmatprep.subr.mxu0 0.0
        %v2266 = vand.u32 %v2233, 4294901760
        %2267 = vmatpush1.msra.mxu0 %v2266
        %2268 = vmatprep.subr.mxu0 0.0
        %v2269 = vand.u32 %v2234, 4294901760
        %2270 = vmatpush1.msra.mxu0 %v2269
        %2271 = vmatprep.subr.mxu0 0.0
        %v2272 = vand.u32 %v2235, 4294901760
        %2273 = vmatpush1.msra.mxu0 %v2272
        %2274 = vmatprep.subr.mxu0 0.0
        %v2275 = vand.u32 %v2236, 4294901760
        %2276 = vmatpush1.msra.mxu0 %v2275
        %2277 = vmatprep.subr.mxu0 0.0
        %v2278 = vand.u32 %v2237, 4294901760
        %2279 = vmatpush1.msra.mxu0 %v2278
        %2280 = vmatprep.subr.mxu0 0.0
        %v2281 = vand.u32 %v2238, 4294901760
        %2282 = vmatpush1.msra.mxu0 %v2281
        %2283 = vmatprep.subr.mxu0 0.0
        %v2284 = vand.u32 %v2239, 4294901760
        %2285 = vmatpush1.msra.mxu0 %v2284
        %2286 = vmatprep.subr.mxu0 0.0
        %v2287 = vand.u32 %v2240, 4294901760
        %2288 = vmatpush1.msra.mxu0 %v2287
        %2289 = vmatprep.subr.mxu0 0.0
        %v2290 = vand.u32 %v2241, 4294901760
        %2291 = vmatpush1.msra.mxu0 %v2290
        %2292 = vmatprep.subr.mxu0 0.0
        %2293 = vmatpush1.msra.mxu0 0.0
        %2294 = vmatprep.subr.mxu0 0.0
        %2295 = vmatpush1.msra.mxu0 0.0
        %2296 = vmatprep.subr.mxu0 0.0
        %2297 = vmatpush1.msra.mxu0 0.0
        %2298 = vmatprep.subr.mxu0 0.0
        %2299 = vmatpush1.msra.mxu0 0.0
        %2300 = vmatprep.subr.mxu0 0.0
        %2301 = vmatpush1.msra.mxu0 0.0
        %2302 = vmatprep.subr.mxu0 0.0
        %2303 = vmatpush1.msra.mxu0 0.0
        %2304 = vmatprep.subr.mxu0 0.0
        %2305 = vmatpush1.msra.mxu0 0.0
        %2306 = vmatprep.subr.mxu0 0.0
        %2307 = vmatpush1.msra.mxu0 0.0
        %2308 = vmatprep.subr.mxu0 0.0
        %2309 = vmatpush1.msra.mxu0 0.0
        %2310 = vmatprep.subr.mxu0 0.0
        %2311 = vmatpush1.msra.mxu0 0.0
        %2312 = vmatprep.subr.mxu0 0.0
        %2313 = vmatpush1.msra.mxu0 0.0
        %2314 = vmatprep.subr.mxu0 0.0
        %2315 = vmatpush1.msra.mxu0 0.0
        %2316 = vmatprep.subr.mxu0 0.0
        %2317 = vmatpush1.msra.mxu0 0.0
        %2318 = vmatprep.subr.mxu0 0.0
        %2319 = vmatpush1.msra.mxu0 0.0
        %2320 = vmatprep.subr.mxu0 0.0
        %2321 = vmatpush1.msra.mxu0 0.0
        %2322 = vmatprep.subr.mxu0 0.0
        %2323 = vmatpush1.msra.mxu0 0.0
        %2324 = vmatprep.mubr.f32.mxu0 0.0
        %v2325 = vand.u32 %v2224, 4294901760
        %v2326 = vsub.f32 %v2224, %v2325
        %v2327 = vand.u32 %v2326, 4294901760
        %v2328 = vsub.f32 %v2326, %v2327
        %v2329 = vand.u32 %v2328, 4294901760
        %2330 = vmatmul.mubr.f32.gmra.mrb[0].mxu0 %v2329
        %v2331 = vpop.f32.mrb[0].mxu0
        %v2332 = vadd.f32 %v2243, %v2331
        %v2333 = vpop.f32.mrb[0].mxu0
        %2334 = vmatprep.mubr.f32.mxu0 0.0
        %v2335 = vand.u32 %v2225, 4294901760
        %v2336 = vsub.f32 %v2225, %v2335
        %v2337 = vand.u32 %v2336, 4294901760
        %v2338 = vsub.f32 %v2336, %v2337
        %v2339 = vand.u32 %v2338, 4294901760
        %2340 = vmatmul.mubr.f32.gmra.mrb[0].mxu0 %v2339
        %v2341 = vpop.f32.mrb[0].mxu0
        %v2342 = vadd.f32 %v2243, %v2341
        %v2343 = vpop.f32.mrb[0].mxu0
        %2344 = vdwg.mxu0
        %2345 = vmatprep.subr.mxu0 0.0
        %v2346 = vand.u32 %v2226, 4294901760
        %v2347 = vsub.f32 %v2226, %v2346
        %v2348 = vand.u32 %v2347, 4294901760
        %v2349 = vsub.f32 %v2347, %v2348
        %v2350 = vand.u32 %v2349, 4294901760
        %2351 = vmatpush1.msra.mxu0 %v2350
        %2352 = vmatprep.subr.mxu0 0.0
        %v2353 = vand.u32 %v2227, 4294901760
        %v2354 = vsub.f32 %v2227, %v2353
        %v2355 = vand.u32 %v2354, 4294901760
        %v2356 = vsub.f32 %v2354, %v2355
        %v2357 = vand.u32 %v2356, 4294901760
        %2358 = vmatpush1.msra.mxu0 %v2357
        %2359 = vmatprep.subr.mxu0 0.0
        %v2360 = vand.u32 %v2228, 4294901760
        %v2361 = vsub.f32 %v2228, %v2360
        %v2362 = vand.u32 %v2361, 4294901760
        %v2363 = vsub.f32 %v2361, %v2362
        %v2364 = vand.u32 %v2363, 4294901760
        %2365 = vmatpush1.msra.mxu0 %v2364
        %2366 = vmatprep.subr.mxu0 0.0
        %v2367 = vand.u32 %v2229, 4294901760
        %v2368 = vsub.f32 %v2229, %v2367
        %v2369 = vand.u32 %v2368, 4294901760
        %v2370 = vsub.f32 %v2368, %v2369
        %v2371 = vand.u32 %v2370, 4294901760
        %2372 = vmatpush1.msra.mxu0 %v2371
        %2373 = vmatprep.subr.mxu0 0.0
        %v2374 = vand.u32 %v2230, 4294901760
        %v2375 = vsub.f32 %v2230, %v2374
        %v2376 = vand.u32 %v2375, 4294901760
        %v2377 = vsub.f32 %v2375, %v2376
        %v2378 = vand.u32 %v2377, 4294901760
        %2379 = vmatpush1.msra.mxu0 %v2378
        %2380 = vmatprep.subr.mxu0 0.0
        %v2381 = vand.u32 %v2231, 4294901760
        %v2382 = vsub.f32 %v2231, %v2381
        %v2383 = vand.u32 %v2382, 4294901760
        %v2384 = vsub.f32 %v2382, %v2383
        %v2385 = vand.u32 %v2384, 4294901760
        %2386 = vmatpush1.msra.mxu0 %v2385
        %2387 = vmatprep.subr.mxu0 0.0
        %v2388 = vand.u32 %v2232, 4294901760
        %v2389 = vsub.f32 %v2232, %v2388
        %v2390 = vand.u32 %v2389, 4294901760
        %v2391 = vsub.f32 %v2389, %v2390
        %v2392 = vand.u32 %v2391, 4294901760
        %2393 = vmatpush1.msra.mxu0 %v2392
        %2394 = vmatprep.subr.mxu0 0.0
        %v2395 = vand.u32 %v2233, 4294901760
        %v2396 = vsub.f32 %v2233, %v2395
        %v2397 = vand.u32 %v2396, 4294901760
        %v2398 = vsub.f32 %v2396, %v2397
        %v2399 = vand.u32 %v2398, 4294901760
        %2400 = vmatpush1.msra.mxu0 %v2399
        %2401 = vmatprep.subr.mxu0 0.0
        %v2402 = vand.u32 %v2234, 4294901760
        %v2403 = vsub.f32 %v2234, %v2402
        %v2404 = vand.u32 %v2403, 4294901760
        %v2405 = vsub.f32 %v2403, %v2404
        %v2406 = vand.u32 %v2405, 4294901760
        %2407 = vmatpush1.msra.mxu0 %v2406
        %2408 = vmatprep.subr.mxu0 0.0
        %v2409 = vand.u32 %v2235, 4294901760
        %v2410 = vsub.f32 %v2235, %v2409
        %v2411 = vand.u32 %v2410, 4294901760
        %v2412 = vsub.f32 %v2410, %v2411
        %v2413 = vand.u32 %v2412, 4294901760
        %2414 = vmatpush1.msra.mxu0 %v2413
        %2415 = vmatprep.subr.mxu0 0.0
        %v2416 = vand.u32 %v2236, 4294901760
        %v2417 = vsub.f32 %v2236, %v2416
        %v2418 = vand.u32 %v2417, 4294901760
        %v2419 = vsub.f32 %v2417, %v2418
        %v2420 = vand.u32 %v2419, 4294901760
        %2421 = vmatpush1.msra.mxu0 %v2420
        %2422 = vmatprep.subr.mxu0 0.0
        %v2423 = vand.u32 %v2237, 4294901760
        %v2424 = vsub.f32 %v2237, %v2423
        %v2425 = vand.u32 %v2424, 4294901760
        %v2426 = vsub.f32 %v2424, %v2425
        %v2427 = vand.u32 %v2426, 4294901760
        %2428 = vmatpush1.msra.mxu0 %v2427
        %2429 = vmatprep.subr.mxu0 0.0
        %v2430 = vand.u32 %v2238, 4294901760
        %v2431 = vsub.f32 %v2238, %v2430
        %v2432 = vand.u32 %v2431, 4294901760
        %v2433 = vsub.f32 %v2431, %v2432
        %v2434 = vand.u32 %v2433, 4294901760
        %2435 = vmatpush1.msra.mxu0 %v2434
        %2436 = vmatprep.subr.mxu0 0.0
        %v2437 = vand.u32 %v2239, 4294901760
        %v2438 = vsub.f32 %v2239, %v2437
        %v2439 = vand.u32 %v2438, 4294901760
        %v2440 = vsub.f32 %v2438, %v2439
        %v2441 = vand.u32 %v2440, 4294901760
        %2442 = vmatpush1.msra.mxu0 %v2441
        %2443 = vmatprep.subr.mxu0 0.0
        %v2444 = vand.u32 %v2240, 4294901760
        %v2445 = vsub.f32 %v2240, %v2444
        %v2446 = vand.u32 %v2445, 4294901760
        %v2447 = vsub.f32 %v2445, %v2446
        %v2448 = vand.u32 %v2447, 4294901760
        %2449 = vmatpush1.msra.mxu0 %v2448
        %2450 = vmatprep.subr.mxu0 0.0
        %v2451 = vand.u32 %v2241, 4294901760
        %v2452 = vsub.f32 %v2241, %v2451
        %v2453 = vand.u32 %v2452, 4294901760
        %v2454 = vsub.f32 %v2452, %v2453
        %v2455 = vand.u32 %v2454, 4294901760
        %2456 = vmatpush1.msra.mxu0 %v2455
        %2457 = vmatprep.subr.mxu0 0.0
        %2458 = vmatpush1.msra.mxu0 0.0
        %2459 = vmatprep.subr.mxu0 0.0
        %2460 = vmatpush1.msra.mxu0 0.0
        %2461 = vmatprep.subr.mxu0 0.0
        %2462 = vmatpush1.msra.mxu0 0.0
        %2463 = vmatprep.subr.mxu0 0.0
        %2464 = vmatpush1.msra.mxu0 0.0
        %2465 = vmatprep.subr.mxu0 0.0
        %2466 = vmatpush1.msra.mxu0 0.0
        %2467 = vmatprep.subr.mxu0 0.0
        %2468 = vmatpush1.msra.mxu0 0.0
        %2469 = vmatprep.subr.mxu0 0.0
        %2470 = vmatpush1.msra.mxu0 0.0
        %2471 = vmatprep.subr.mxu0 0.0
        %2472 = vmatpush1.msra.mxu0 0.0
        %2473 = vmatprep.subr.mxu0 0.0
        %2474 = vmatpush1.msra.mxu0 0.0
        %2475 = vmatprep.subr.mxu0 0.0
        %2476 = vmatpush1.msra.mxu0 0.0
        %2477 = vmatprep.subr.mxu0 0.0
        %2478 = vmatpush1.msra.mxu0 0.0
        %2479 = vmatprep.subr.mxu0 0.0
        %2480 = vmatpush1.msra.mxu0 0.0
        %2481 = vmatprep.subr.mxu0 0.0
        %2482 = vmatpush1.msra.mxu0 0.0
        %2483 = vmatprep.subr.mxu0 0.0
        %2484 = vmatpush1.msra.mxu0 0.0
        %2485 = vmatprep.subr.mxu0 0.0
        %2486 = vmatpush1.msra.mxu0 0.0
        %2487 = vmatprep.subr.mxu0 0.0
        %2488 = vmatpush1.msra.mxu0 0.0
        %2489 = vmatprep.mubr.f32.mxu0 0.0
        %v2490 = vand.u32 %v2224, 4294901760
        %2491 = vmatmul.mubr.f32.gmra.mrb[0].mxu0 %v2490
        %v2492 = vpop.f32.mrb[0].mxu0
        %v2493 = vadd.f32 %v2332, %v2492
        %v2494 = vpop.f32.mrb[0].mxu0
        %2495 = vmatprep.mubr.f32.mxu0 0.0
        %v2496 = vand.u32 %v2225, 4294901760
        %2497 = vmatmul.mubr.f32.gmra.mrb[0].mxu0 %v2496
        %v2498 = vpop.f32.mrb[0].mxu0
        %v2499 = vadd.f32 %v2342, %v2498
        %v2500 = vpop.f32.mrb[0].mxu0
        %2501 = vdwg.mxu0
        %2502 = vmatprep.subr.mxu0 0.0
        %v2503 = vand.u32 %v2226, 4294901760
        %v2504 = vsub.f32 %v2226, %v2503
        %2505 = vmatpush1.msra.mxu0 %v2504
        %2506 = vmatprep.subr.mxu0 0.0
        %v2507 = vand.u32 %v2227, 4294901760
        %v2508 = vsub.f32 %v2227, %v2507
        %2509 = vmatpush1.msra.mxu0 %v2508
        %2510 = vmatprep.subr.mxu0 0.0
        %v2511 = vand.u32 %v2228, 4294901760
        %v2512 = vsub.f32 %v2228, %v2511
        %2513 = vmatpush1.msra.mxu0 %v2512
        %2514 = vmatprep.subr.mxu0 0.0
        %v2515 = vand.u32 %v2229, 4294901760
        %v2516 = vsub.f32 %v2229, %v2515
        %2517 = vmatpush1.msra.mxu0 %v2516
        %2518 = vmatprep.subr.mxu0 0.0
        %v2519 = vand.u32 %v2230, 4294901760
        %v2520 = vsub.f32 %v2230, %v2519
        %2521 = vmatpush1.msra.mxu0 %v2520
        %2522 = vmatprep.subr.mxu0 0.0
        %v2523 = vand.u32 %v2231, 4294901760
        %v2524 = vsub.f32 %v2231, %v2523
        %2525 = vmatpush1.msra.mxu0 %v2524
        %2526 = vmatprep.subr.mxu0 0.0
        %v2527 = vand.u32 %v2232, 4294901760
        %v2528 = vsub.f32 %v2232, %v2527
        %2529 = vmatpush1.msra.mxu0 %v2528
        %2530 = vmatprep.subr.mxu0 0.0
        %v2531 = vand.u32 %v2233, 4294901760
        %v2532 = vsub.f32 %v2233, %v2531
        %2533 = vmatpush1.msra.mxu0 %v2532
        %2534 = vmatprep.subr.mxu0 0.0
        %v2535 = vand.u32 %v2234, 4294901760
        %v2536 = vsub.f32 %v2234, %v2535
        %2537 = vmatpush1.msra.mxu0 %v2536
        %2538 = vmatprep.subr.mxu0 0.0
        %v2539 = vand.u32 %v2235, 4294901760
        %v2540 = vsub.f32 %v2235, %v2539
        %2541 = vmatpush1.msra.mxu0 %v2540
        %2542 = vmatprep.subr.mxu0 0.0
        %v2543 = vand.u32 %v2236, 4294901760
        %v2544 = vsub.f32 %v2236, %v2543
        %2545 = vmatpush1.msra.mxu0 %v2544
        %2546 = vmatprep.subr.mxu0 0.0
        %v2547 = vand.u32 %v2237, 4294901760
        %v2548 = vsub.f32 %v2237, %v2547
        %2549 = vmatpush1.msra.mxu0 %v2548
        %2550 = vmatprep.subr.mxu0 0.0
        %v2551 = vand.u32 %v2238, 4294901760
        %v2552 = vsub.f32 %v2238, %v2551
        %2553 = vmatpush1.msra.mxu0 %v2552
        %2554 = vmatprep.subr.mxu0 0.0
        %v2555 = vand.u32 %v2239, 4294901760
        %v2556 = vsub.f32 %v2239, %v2555
        %2557 = vmatpush1.msra.mxu0 %v2556
        %2558 = vmatprep.subr.mxu0 0.0
        %v2559 = vand.u32 %v2240, 4294901760
        %v2560 = vsub.f32 %v2240, %v2559
        %2561 = vmatpush1.msra.mxu0 %v2560
        %2562 = vmatprep.subr.mxu0 0.0
        %v2563 = vand.u32 %v2241, 4294901760
        %v2564 = vsub.f32 %v2241, %v2563
        %2565 = vmatpush1.msra.mxu0 %v2564
        %2566 = vmatprep.subr.mxu0 0.0
        %2567 = vmatpush1.msra.mxu0 0.0
        %2568 = vmatprep.subr.mxu0 0.0
        %2569 = vmatpush1.msra.mxu0 0.0
        %2570 = vmatprep.subr.mxu0 0.0
        %2571 = vmatpush1.msra.mxu0 0.0
        %2572 = vmatprep.subr.mxu0 0.0
        %2573 = vmatpush1.msra.mxu0 0.0
        %2574 = vmatprep.subr.mxu0 0.0
        %2575 = vmatpush1.msra.mxu0 0.0
        %2576 = vmatprep.subr.mxu0 0.0
        %2577 = vmatpush1.msra.mxu0 0.0
        %2578 = vmatprep.subr.mxu0 0.0
        %2579 = vmatpush1.msra.mxu0 0.0
        %2580 = vmatprep.subr.mxu0 0.0
        %2581 = vmatpush1.msra.mxu0 0.0
        %2582 = vmatprep.subr.mxu0 0.0
        %2583 = vmatpush1.msra.mxu0 0.0
        %2584 = vmatprep.subr.mxu0 0.0
        %2585 = vmatpush1.msra.mxu0 0.0
        %2586 = vmatprep.subr.mxu0 0.0
        %2587 = vmatpush1.msra.mxu0 0.0
        %2588 = vmatprep.subr.mxu0 0.0
        %2589 = vmatpush1.msra.mxu0 0.0
        %2590 = vmatprep.subr.mxu0 0.0
        %2591 = vmatpush1.msra.mxu0 0.0
        %2592 = vmatprep.subr.mxu0 0.0
        %2593 = vmatpush1.msra.mxu0 0.0
        %2594 = vmatprep.subr.mxu0 0.0
        %2595 = vmatpush1.msra.mxu0 0.0
        %2596 = vmatprep.subr.mxu0 0.0
        %2597 = vmatpush1.msra.mxu0 0.0
        %2598 = vmatprep.mubr.f32.mxu0 0.0
        %v2599 = vand.u32 %v2224, 4294901760
        %v2600 = vsub.f32 %v2224, %v2599
        %2601 = vmatmul.mubr.f32.gmra.mrb[0].mxu0 %v2600
        %v2602 = vpop.f32.mrb[0].mxu0
        %v2603 = vadd.f32 %v2493, %v2602
        %v2604 = vpop.f32.mrb[0].mxu0
        %2605 = vmatprep.mubr.f32.mxu0 0.0
        %v2606 = vand.u32 %v2225, 4294901760
        %v2607 = vsub.f32 %v2225, %v2606
        %2608 = vmatmul.mubr.f32.gmra.mrb[0].mxu0 %v2607
        %v2609 = vpop.f32.mrb[0].mxu0
        %v2610 = vadd.f32 %v2499, %v2609
        %v2611 = vpop.f32.mrb[0].mxu0
        %2612 = vdwg.mxu0
        %2613 = vmatprep.subr.mxu0 0.0
        %v2614 = vand.u32 %v2226, 4294901760
        %2615 = vmatpush1.msra.mxu0 %v2614
        %2616 = vmatprep.subr.mxu0 0.0
        %v2617 = vand.u32 %v2227, 4294901760
        %2618 = vmatpush1.msra.mxu0 %v2617
        %2619 = vmatprep.subr.mxu0 0.0
        %v2620 = vand.u32 %v2228, 4294901760
        %2621 = vmatpush1.msra.mxu0 %v2620
        %2622 = vmatprep.subr.mxu0 0.0
        %v2623 = vand.u32 %v2229, 4294901760
        %2624 = vmatpush1.msra.mxu0 %v2623
        %2625 = vmatprep.subr.mxu0 0.0
        %v2626 = vand.u32 %v2230, 4294901760
        %2627 = vmatpush1.msra.mxu0 %v2626
        %2628 = vmatprep.subr.mxu0 0.0
        %v2629 = vand.u32 %v2231, 4294901760
        %2630 = vmatpush1.msra.mxu0 %v2629
        %2631 = vmatprep.subr.mxu0 0.0
        %v2632 = vand.u32 %v2232, 4294901760
        %2633 = vmatpush1.msra.mxu0 %v2632
        %2634 = vmatprep.subr.mxu0 0.0
        %v2635 = vand.u32 %v2233, 4294901760
        %2636 = vmatpush1.msra.mxu0 %v2635
        %2637 = vmatprep.subr.mxu0 0.0
        %v2638 = vand.u32 %v2234, 4294901760
        %2639 = vmatpush1.msra.mxu0 %v2638
        %2640 = vmatprep.subr.mxu0 0.0
        %v2641 = vand.u32 %v2235, 4294901760
        %2642 = vmatpush1.msra.mxu0 %v2641
        %2643 = vmatprep.subr.mxu0 0.0
        %v2644 = vand.u32 %v2236, 4294901760
        %2645 = vmatpush1.msra.mxu0 %v2644
        %2646 = vmatprep.subr.mxu0 0.0
        %v2647 = vand.u32 %v2237, 4294901760
        %2648 = vmatpush1.msra.mxu0 %v2647
        %2649 = vmatprep.subr.mxu0 0.0
        %v2650 = vand.u32 %v2238, 4294901760
        %2651 = vmatpush1.msra.mxu0 %v2650
        %2652 = vmatprep.subr.mxu0 0.0
        %v2653 = vand.u32 %v2239, 4294901760
        %2654 = vmatpush1.msra.mxu0 %v2653
        %2655 = vmatprep.subr.mxu0 0.0
        %v2656 = vand.u32 %v2240, 4294901760
        %2657 = vmatpush1.msra.mxu0 %v2656
        %2658 = vmatprep.subr.mxu0 0.0
        %v2659 = vand.u32 %v2241, 4294901760
        %2660 = vmatpush1.msra.mxu0 %v2659
        %2661 = vmatprep.subr.mxu0 0.0
        %2662 = vmatpush1.msra.mxu0 0.0
        %2663 = vmatprep.subr.mxu0 0.0
        %2664 = vmatpush1.msra.mxu0 0.0
        %2665 = vmatprep.subr.mxu0 0.0
        %2666 = vmatpush1.msra.mxu0 0.0
        %2667 = vmatprep.subr.mxu0 0.0
        %2668 = vmatpush1.msra.mxu0 0.0
        %2669 = vmatprep.subr.mxu0 0.0
        %2670 = vmatpush1.msra.mxu0 0.0
        %2671 = vmatprep.subr.mxu0 0.0
        %2672 = vmatpush1.msra.mxu0 0.0
        %2673 = vmatprep.subr.mxu0 0.0
        %2674 = vmatpush1.msra.mxu0 0.0
        %2675 = vmatprep.subr.mxu0 0.0
        %2676 = vmatpush1.msra.mxu0 0.0
        %2677 = vmatprep.subr.mxu0 0.0
        %2678 = vmatpush1.msra.mxu0 0.0
        %2679 = vmatprep.subr.mxu0 0.0
        %2680 = vmatpush1.msra.mxu0 0.0
        %2681 = vmatprep.subr.mxu0 0.0
        %2682 = vmatpush1.msra.mxu0 0.0
        %2683 = vmatprep.subr.mxu0 0.0
        %2684 = vmatpush1.msra.mxu0 0.0
        %2685 = vmatprep.subr.mxu0 0.0
        %2686 = vmatpush1.msra.mxu0 0.0
        %2687 = vmatprep.subr.mxu0 0.0
        %2688 = vmatpush1.msra.mxu0 0.0
        %2689 = vmatprep.subr.mxu0 0.0
        %2690 = vmatpush1.msra.mxu0 0.0
        %2691 = vmatprep.subr.mxu0 0.0
        %2692 = vmatpush1.msra.mxu0 0.0
        %2693 = vmatprep.mubr.f32.mxu0 0.0
        %v2694 = vand.u32 %v2224, 4294901760
        %v2695 = vsub.f32 %v2224, %v2694
        %v2696 = vand.u32 %v2695, 4294901760
        %2697 = vmatmul.mubr.f32.gmra.mrb[0].mxu0 %v2696
        %v2698 = vpop.f32.mrb[0].mxu0
        %v2699 = vadd.f32 %v2603, %v2698
        %v2700 = vpop.f32.mrb[0].mxu0
        %2701 = vmatprep.mubr.f32.mxu0 0.0
        %v2702 = vand.u32 %v2225, 4294901760
        %v2703 = vsub.f32 %v2225, %v2702
        %v2704 = vand.u32 %v2703, 4294901760
        %2705 = vmatmul.mubr.f32.gmra.mrb[0].mxu0 %v2704
        %v2706 = vpop.f32.mrb[0].mxu0
        %v2707 = vadd.f32 %v2610, %v2706
        %v2708 = vpop.f32.mrb[0].mxu0
        %2709 = vdwg.mxu0
        %2710 = vmatprep.subr.mxu0 0.0
        %v2711 = vand.u32 %v2226, 4294901760
        %v2712 = vsub.f32 %v2226, %v2711
        %v2713 = vand.u32 %v2712, 4294901760
        %2714 = vmatpush1.msra.mxu0 %v2713
        %2715 = vmatprep.subr.mxu0 0.0
        %v2716 = vand.u32 %v2227, 4294901760
        %v2717 = vsub.f32 %v2227, %v2716
        %v2718 = vand.u32 %v2717, 4294901760
        %2719 = vmatpush1.msra.mxu0 %v2718
        %2720 = vmatprep.subr.mxu0 0.0
        %v2721 = vand.u32 %v2228, 4294901760
        %v2722 = vsub.f32 %v2228, %v2721
        %v2723 = vand.u32 %v2722, 4294901760
        %2724 = vmatpush1.msra.mxu0 %v2723
        %2725 = vmatprep.subr.mxu0 0.0
        %v2726 = vand.u32 %v2229, 4294901760
        %v2727 = vsub.f32 %v2229, %v2726
        %v2728 = vand.u32 %v2727, 4294901760
        %2729 = vmatpush1.msra.mxu0 %v2728
        %2730 = vmatprep.subr.mxu0 0.0
        %v2731 = vand.u32 %v2230, 4294901760
        %v2732 = vsub.f32 %v2230, %v2731
        %v2733 = vand.u32 %v2732, 4294901760
        %2734 = vmatpush1.msra.mxu0 %v2733
        %2735 = vmatprep.subr.mxu0 0.0
        %v2736 = vand.u32 %v2231, 4294901760
        %v2737 = vsub.f32 %v2231, %v2736
        %v2738 = vand.u32 %v2737, 4294901760
        %2739 = vmatpush1.msra.mxu0 %v2738
        %2740 = vmatprep.subr.mxu0 0.0
        %v2741 = vand.u32 %v2232, 4294901760
        %v2742 = vsub.f32 %v2232, %v2741
        %v2743 = vand.u32 %v2742, 4294901760
        %2744 = vmatpush1.msra.mxu0 %v2743
        %2745 = vmatprep.subr.mxu0 0.0
        %v2746 = vand.u32 %v2233, 4294901760
        %v2747 = vsub.f32 %v2233, %v2746
        %v2748 = vand.u32 %v2747, 4294901760
        %2749 = vmatpush1.msra.mxu0 %v2748
        %2750 = vmatprep.subr.mxu0 0.0
        %v2751 = vand.u32 %v2234, 4294901760
        %v2752 = vsub.f32 %v2234, %v2751
        %v2753 = vand.u32 %v2752, 4294901760
        %2754 = vmatpush1.msra.mxu0 %v2753
        %2755 = vmatprep.subr.mxu0 0.0
        %v2756 = vand.u32 %v2235, 4294901760
        %v2757 = vsub.f32 %v2235, %v2756
        %v2758 = vand.u32 %v2757, 4294901760
        %2759 = vmatpush1.msra.mxu0 %v2758
        %2760 = vmatprep.subr.mxu0 0.0
        %v2761 = vand.u32 %v2236, 4294901760
        %v2762 = vsub.f32 %v2236, %v2761
        %v2763 = vand.u32 %v2762, 4294901760
        %2764 = vmatpush1.msra.mxu0 %v2763
        %2765 = vmatprep.subr.mxu0 0.0
        %v2766 = vand.u32 %v2237, 4294901760
        %v2767 = vsub.f32 %v2237, %v2766
        %v2768 = vand.u32 %v2767, 4294901760
        %2769 = vmatpush1.msra.mxu0 %v2768
        %2770 = vmatprep.subr.mxu0 0.0
        %v2771 = vand.u32 %v2238, 4294901760
        %v2772 = vsub.f32 %v2238, %v2771
        %v2773 = vand.u32 %v2772, 4294901760
        %2774 = vmatpush1.msra.mxu0 %v2773
        %2775 = vmatprep.subr.mxu0 0.0
        %v2776 = vand.u32 %v2239, 4294901760
        %v2777 = vsub.f32 %v2239, %v2776
        %v2778 = vand.u32 %v2777, 4294901760
        %2779 = vmatpush1.msra.mxu0 %v2778
        %2780 = vmatprep.subr.mxu0 0.0
        %v2781 = vand.u32 %v2240, 4294901760
        %v2782 = vsub.f32 %v2240, %v2781
        %v2783 = vand.u32 %v2782, 4294901760
        %2784 = vmatpush1.msra.mxu0 %v2783
        %2785 = vmatprep.subr.mxu0 0.0
        %v2786 = vand.u32 %v2241, 4294901760
        %v2787 = vsub.f32 %v2241, %v2786
        %v2788 = vand.u32 %v2787, 4294901760
        %2789 = vmatpush1.msra.mxu0 %v2788
        %2790 = vmatprep.subr.mxu0 0.0
        %2791 = vmatpush1.msra.mxu0 0.0
        %2792 = vmatprep.subr.mxu0 0.0
        %2793 = vmatpush1.msra.mxu0 0.0
        %2794 = vmatprep.subr.mxu0 0.0
        %2795 = vmatpush1.msra.mxu0 0.0
        %2796 = vmatprep.subr.mxu0 0.0
        %2797 = vmatpush1.msra.mxu0 0.0
        %2798 = vmatprep.subr.mxu0 0.0
        %2799 = vmatpush1.msra.mxu0 0.0
        %2800 = vmatprep.subr.mxu0 0.0
        %2801 = vmatpush1.msra.mxu0 0.0
        %2802 = vmatprep.subr.mxu0 0.0
        %2803 = vmatpush1.msra.mxu0 0.0
        %2804 = vmatprep.subr.mxu0 0.0
        %2805 = vmatpush1.msra.mxu0 0.0
        %2806 = vmatprep.subr.mxu0 0.0
        %2807 = vmatpush1.msra.mxu0 0.0
        %2808 = vmatprep.subr.mxu0 0.0
        %2809 = vmatpush1.msra.mxu0 0.0
        %2810 = vmatprep.subr.mxu0 0.0
        %2811 = vmatpush1.msra.mxu0 0.0
        %2812 = vmatprep.subr.mxu0 0.0
        %2813 = vmatpush1.msra.mxu0 0.0
        %2814 = vmatprep.subr.mxu0 0.0
        %2815 = vmatpush1.msra.mxu0 0.0
        %2816 = vmatprep.subr.mxu0 0.0
        %2817 = vmatpush1.msra.mxu0 0.0
        %2818 = vmatprep.subr.mxu0 0.0
        %2819 = vmatpush1.msra.mxu0 0.0
        %2820 = vmatprep.subr.mxu0 0.0
        %2821 = vmatpush1.msra.mxu0 0.0
        %2822 = vmatprep.mubr.f32.mxu0 0.0
        %v2823 = vand.u32 %v2224, 4294901760
        %2824 = vmatmul.mubr.f32.gmra.mrb[0].mxu0 %v2823
        %v2825 = vpop.f32.mrb[0].mxu0
        %v2826 = vadd.f32 %v2699, %v2825
        %v2827 = vpop.f32.mrb[0].mxu0
        %2828 = vmatprep.mubr.f32.mxu0 0.0
        %v2829 = vand.u32 %v2225, 4294901760
        %2830 = vmatmul.mubr.f32.gmra.mrb[0].mxu0 %v2829
        %v2831 = vpop.f32.mrb[0].mxu0
        %v2832 = vadd.f32 %v2707, %v2831
        %v2833 = vpop.f32.mrb[0].mxu0
        %2834 = vdwg.mxu0
        %2835 = vmatprep.subr.mxu0 0.0
        %v2836 = vand.u32 %v2226, 4294901760
        %2837 = vmatpush1.msra.mxu0 %v2836
        %2838 = vmatprep.subr.mxu0 0.0
        %v2839 = vand.u32 %v2227, 4294901760
        %2840 = vmatpush1.msra.mxu0 %v2839
        %2841 = vmatprep.subr.mxu0 0.0
        %v2842 = vand.u32 %v2228, 4294901760
        %2843 = vmatpush1.msra.mxu0 %v2842
        %2844 = vmatprep.subr.mxu0 0.0
        %v2845 = vand.u32 %v2229, 4294901760
        %2846 = vmatpush1.msra.mxu0 %v2845
        %2847 = vmatprep.subr.mxu0 0.0
        %v2848 = vand.u32 %v2230, 4294901760
        %2849 = vmatpush1.msra.mxu0 %v2848
        %2850 = vmatprep.subr.mxu0 0.0
        %v2851 = vand.u32 %v2231, 4294901760
        %2852 = vmatpush1.msra.mxu0 %v2851
        %2853 = vmatprep.subr.mxu0 0.0
        %v2854 = vand.u32 %v2232, 4294901760
        %2855 = vmatpush1.msra.mxu0 %v2854
        %2856 = vmatprep.subr.mxu0 0.0
        %v2857 = vand.u32 %v2233, 4294901760
        %2858 = vmatpush1.msra.mxu0 %v2857
        %2859 = vmatprep.subr.mxu0 0.0
        %v2860 = vand.u32 %v2234, 4294901760
        %2861 = vmatpush1.msra.mxu0 %v2860
        %2862 = vmatprep.subr.mxu0 0.0
        %v2863 = vand.u32 %v2235, 4294901760
        %2864 = vmatpush1.msra.mxu0 %v2863
        %2865 = vmatprep.subr.mxu0 0.0
        %v2866 = vand.u32 %v2236, 4294901760
        %2867 = vmatpush1.msra.mxu0 %v2866
        %2868 = vmatprep.subr.mxu0 0.0
        %v2869 = vand.u32 %v2237, 4294901760
        %2870 = vmatpush1.msra.mxu0 %v2869
        %2871 = vmatprep.subr.mxu0 0.0
        %v2872 = vand.u32 %v2238, 4294901760
        %2873 = vmatpush1.msra.mxu0 %v2872
        %2874 = vmatprep.subr.mxu0 0.0
        %v2875 = vand.u32 %v2239, 4294901760
        %2876 = vmatpush1.msra.mxu0 %v2875
        %2877 = vmatprep.subr.mxu0 0.0
        %v2878 = vand.u32 %v2240, 4294901760
        %2879 = vmatpush1.msra.mxu0 %v2878
        %2880 = vmatprep.subr.mxu0 0.0
        %v2881 = vand.u32 %v2241, 4294901760
        %2882 = vmatpush1.msra.mxu0 %v2881
        %2883 = vmatprep.subr.mxu0 0.0
        %2884 = vmatpush1.msra.mxu0 0.0
        %2885 = vmatprep.subr.mxu0 0.0
        %2886 = vmatpush1.msra.mxu0 0.0
        %2887 = vmatprep.subr.mxu0 0.0
        %2888 = vmatpush1.msra.mxu0 0.0
        %2889 = vmatprep.subr.mxu0 0.0
        %2890 = vmatpush1.msra.mxu0 0.0
        %2891 = vmatprep.subr.mxu0 0.0
        %2892 = vmatpush1.msra.mxu0 0.0
        %2893 = vmatprep.subr.mxu0 0.0
        %2894 = vmatpush1.msra.mxu0 0.0
        %2895 = vmatprep.subr.mxu0 0.0
        %2896 = vmatpush1.msra.mxu0 0.0
        %2897 = vmatprep.subr.mxu0 0.0
        %2898 = vmatpush1.msra.mxu0 0.0
        %2899 = vmatprep.subr.mxu0 0.0
        %2900 = vmatpush1.msra.mxu0 0.0
        %2901 = vmatprep.subr.mxu0 0.0
        %2902 = vmatpush1.msra.mxu0 0.0
        %2903 = vmatprep.subr.mxu0 0.0
        %2904 = vmatpush1.msra.mxu0 0.0
        %2905 = vmatprep.subr.mxu0 0.0
        %2906 = vmatpush1.msra.mxu0 0.0
        %2907 = vmatprep.subr.mxu0 0.0
        %2908 = vmatpush1.msra.mxu0 0.0
        %2909 = vmatprep.subr.mxu0 0.0
        %2910 = vmatpush1.msra.mxu0 0.0
        %2911 = vmatprep.subr.mxu0 0.0
        %2912 = vmatpush1.msra.mxu0 0.0
        %2913 = vmatprep.subr.mxu0 0.0
        %2914 = vmatpush1.msra.mxu0 0.0
        %2915 = vmatprep.mubr.f32.mxu0 0.0
        %v2916 = vand.u32 %v2224, 4294901760
        %2917 = vmatmul.mubr.f32.gmra.mrb[0].mxu0 %v2916
        %v2918 = vpop.f32.mrb[0].mxu0
        %v2919 = vadd.f32 %v2826, %v2918
        %v2920 = vpop.f32.mrb[0].mxu0
        %2921 = vmatprep.mubr.f32.mxu0 0.0
        %v2922 = vand.u32 %v2225, 4294901760
        %2923 = vmatmul.mubr.f32.gmra.mrb[0].mxu0 %v2922
        %v2924 = vpop.f32.mrb[0].mxu0
        %v2925 = vadd.f32 %v2832, %v2924
        %v2926 = vpop.f32.mrb[0].mxu0
        %2927 = vdwg.mxu0
        %vm2928 = vcmask 31744
        %2929 = vst.msk [vmem:[%s311] sm:$0xff] %vm2928, %v2919
        %2930 = vst.msk [vmem:[%s311 + $0x8] sm:$0xff] %vm2928, %v2925
        %s2931 = smul.u32 2, %s21
        %p2932 = scmp.lt.s32.totalorder %s2931, 7
        %s2933 = scalar_select %p2932, %s2931, 7
        %s2934 = smul.addr %s2933, 8
        %s2935 = scalar_lea.vmem %s7, %s2934
        // Predicated region
        $region57: #{tpu_custom_call.1} parent=47 // pred_check
          %p2936 = pneg %p191
        $region58: #{tpu_custom_call.1} parent=47 // pred_check_branch
          %2938 = sbr.rel (%p2936) target = $region60
        $region59: #{tpu_custom_call.1} parent=47 // pred_region
          %s2939 = smul.u32 2, %s21
        $region60: #{tpu_custom_call.1} parent=47 // pred_fallthru
          _
      $region48: #{tpu_custom_call.1} parent=5 // pred_fallthru
        _
      %p2940 = scmp.le.s32.totalorder 2, %s16
      // Predicated region
      $region61: #{tpu_custom_call.1} parent=5 // pred_check
        %p2941 = pneg %p2940
      $region62: #{tpu_custom_call.1} parent=5 // pred_check_branch
        %2943 = sbr.rel (%p2941) target = $region64
      $region63: #{tpu_custom_call.1} parent=5 // pred_region
        %s2944 = ssub.s32 %s16, 2
        // Predicated region
        $region65: #{tpu_custom_call.1} parent=63 // pred_check
          %p2945 = pneg %p197
        $region66: #{tpu_custom_call.1} parent=63 // pred_check_branch
          %2947 = sbr.rel (%p2945) target = $region68
        $region67: #{tpu_custom_call.1} parent=63 // pred_region
          %s2948 = smul.u32 2, %s22
          %p2949 = scmp.lt.s32.totalorder %s2948, 7
          %s2950 = scalar_select %p2949, %s2948, 7
          %s2951 = smul.addr %s2950, 8
          %s2952 = scalar_lea.vmem %s7, %s2951
        $region68: #{tpu_custom_call.1} parent=63 // pred_fallthru
          _
      $region64: #{tpu_custom_call.1} parent=5 // pred_fallthru
        _
    $region6: #{tpu_custom_call.1} parent=1 // loop_footer
      %s20 = sadd.s32 1, %s16
    $region7: #{tpu_custom_call.1} parent=1 // loop_footer_branch
      %15 = sbr.rel target = $region3
    $region8: #{tpu_custom_call.1} parent=1 // loop_exit
      _
    %2953 = vsyncpa [#allocation4], 1
    %s2954 = scalar_lea.sflag [#allocation4], 1
    %2955 = vsyncpa %s2954, 1
    %2956 = vsyncpa [#allocation6], 1

</llo_original>
